<compile_context>
chip_gen: v7x
topology: tpu7x:2x2x1
jax: 0.10.0
libtpu: 0.0.40
codegen_flags: <defaults>
</compile_context>

<pallas_src>
import math

import jax
import jax.numpy as jnp
from jax.experimental import pallas as pl
from jax.experimental.pallas import tpu as pltpu

# Small shapes consistent with the module (Conv(chn_in=4, chn_out=128, ker_sz=3)).
B = 2
CIN = 4
COUT = 128          # lane-dense output
H = 16
W = 16
KSZ = 3


# --------------------------------- wrapper ---------------------------------- #

def conv_circular_relu(x_nchw, w_oihw):
    """y = relu(Conv2d(Cin->Cout, k=3, padding=1, padding_mode='circular', bias=False)(x))."""
    Bn, Cin, Hh, Ww = x_nchw.shape
    Cout, Cin2, ksz, ksz2 = w_oihw.shape
    assert Cin2 == Cin and ksz2 == ksz
    pad = ksz // 2
    hw = Hh * Ww
    hp = Hh + 2 * pad          # padded height
    kc = ksz * Cin             # horizontal fold width (3*Cin = 12)

    # --- cheap, non-replicating prep (tiny tensors, 1-2 small XLA fusions) ---
    xh = jnp.transpose(x_nchw, (0, 2, 3, 1))                                   # NHWC
    xp = jnp.pad(xh, ((0, 0), (pad, pad), (pad, pad), (0, 0)), mode="wrap")    # circular
    # Horizontal (W) fold only:  xw[b, hp, w, dx*Cin + c] = xp[b, hp, w+dx, c]
    xw = jnp.concatenate([xp[:, :, dx:dx + Ww, :] for dx in range(ksz)], axis=-1)
    xw = xw.reshape(Bn, hp * Ww, kc)                     # free row-major reshape
    # Per-dy folded weights:  wf[dy, dx*Cin + c, o] = w[o, c, dy, dx]
    wf = jnp.transpose(w_oihw, (2, 3, 1, 0)).reshape(ksz, kc, Cout)

    # ------------------------------ Pallas kernel ---------------------------- #
    def kernel(xw_ref, wf_ref, o_ref):
        # xw_ref: (B, (H+2*pad)*W, ksz*Cin) f32  -- rows are (h_padded, w)
        # wf_ref: (ksz, ksz*Cin, Cout)      f32
        # o_ref : (B, Cout, H*W)            f32  -- NCHW with spatial flattened
        for b in range(Bn):                          # static unroll (small batch)
            acc = None
            for dy in range(ksz):                    # static unroll: ksz MXU matmuls
                # Aligned static row-slice: rows dy*W .. dy*W + H*W - 1 are the
                # (h+dy, w) input windows for every output (h, w).
                p = xw_ref[b, dy * Ww:dy * Ww + hw, :].astype(jnp.bfloat16)
                wq = wf_ref[dy].astype(jnp.bfloat16)
                d = jnp.dot(p, wq, preferred_element_type=jnp.float32)
                acc = d if acc is None else acc + d
            acc = jnp.maximum(acc, 0.0)              # ReLU epilogue in f32
            # Emit NCHW directly: (H*W, Cout) -> (Cout, H*W) on the XLU.
            o_ref[b] = jnp.transpose(acc, (1, 0))

    flops = 2 * Bn * hw * (ksz * ksz * Cin) * Cout
    bytes_accessed = xw.size * 4 + wf.size * 4 + Bn * Cout * hw * 4

    out = pl.pallas_call(
        kernel,
        out_shape=jax.ShapeDtypeStruct((Bn, Cout, hw), jnp.float32),
        grid=(1,),                                   # whole problem fits VMEM: one step
        in_specs=[
            pl.BlockSpec((Bn, hp * Ww, kc), lambda i: (0, 0, 0)),
            pl.BlockSpec((ksz, kc, Cout), lambda i: (0, 0, 0)),
        ],
        out_specs=pl.BlockSpec((Bn, Cout, hw), lambda i: (0, 0, 0)),
        compiler_params=pltpu.CompilerParams(
            dimension_semantics=("arbitrary",),
        ),
        cost_estimate=pl.CostEstimate(
            flops=flops, transcendentals=0, bytes_accessed=bytes_accessed),
    )(xw, wf)

    # Free metadata reshape: (B, Cout, H*W) -> (B, Cout, H, W) (already NCHW).
    return out.reshape(Bn, Cout, Hh, Ww)


# -------------------------------- reference --------------------------------- #

def _reference(x_nchw, w_oihw):
    """Pure-JAX f32 reference on the same bf16-rounded operands (HIGHEST precision)."""
    xb = x_nchw.astype(jnp.bfloat16).astype(jnp.float32)
    wb = w_oihw.astype(jnp.bfloat16).astype(jnp.float32)
    xh = jnp.transpose(xb, (0, 2, 3, 1))
    xp = jnp.pad(xh, ((0, 0), (1, 1), (1, 1), (0, 0)), mode="wrap")
    acc = jnp.zeros((x_nchw.shape[0], H, W, w_oihw.shape[0]), jnp.float32)
    for dy in range(KSZ):
        for dx in range(KSZ):
            acc = acc + jnp.einsum(
                "bhwc,oc->bhwo",
                xp[:, dy:dy + H, dx:dx + W, :],
                wb[:, :, dy, dx],
                precision=jax.lax.Precision.HIGHEST,
            )
    return jnp.transpose(jnp.maximum(acc, 0.0), (0, 3, 1, 2))


# ----------------------------------- main ------------------------------------ #

if __name__ == "__main__":
    key = jax.random.PRNGKey(0)
    kx, kw = jax.random.split(key)

    x = jax.random.normal(kx, (B, CIN, H, W), jnp.float32)
    fan_in = CIN * KSZ * KSZ
    bound = 1.0 / math.sqrt(fan_in)
    w = jax.random.uniform(kw, (COUT, CIN, KSZ, KSZ), jnp.float32, -bound, bound)

    conv = jax.jit(conv_circular_relu)
    y = conv(x, w)
    jax.block_until_ready(y)
    assert y.shape == (B, COUT, H, W)

    y_ref = _reference(x, w)
    err = float(jnp.max(jnp.abs(y - y_ref)))
    assert err < 1e-3, f"max abs err {err}"

    print("KERNEL_OK")
</pallas_src>

<mosaic_0001>
module attributes {stable_mosaic.version = 11 : i64} {
  func.func @kernel(%arg0: i32, %arg1: memref<2x288x12xf32, #tpu.memory_space<vmem>>, %arg2: memref<3x12x128xf32, #tpu.memory_space<vmem>>, %arg3: memref<2x128x256xf32, #tpu.memory_space<vmem>>) attributes {dimension_semantics = [#tpu.dimension_semantics<arbitrary>], iteration_bounds = array<i64: 1>, scalar_prefetch = 0 : i64, scratch_operands = 0 : i64, tpu.core_type = #tpu.core_type<tc>, window_params = [{pipeline_mode = #tpu.pipeline_mode<synchronous>, transform_indices = @transform_0, window_bounds = array<i64: 2, 288, 12>}, {pipeline_mode = #tpu.pipeline_mode<synchronous>, transform_indices = @transform_1, window_bounds = array<i64: 3, 12, 128>}, {pipeline_mode = #tpu.pipeline_mode<synchronous>, transform_indices = @transform_2, window_bounds = array<i64: 2, 128, 256>}]} {
    %c0 = arith.constant 0 : index
    %c0_0 = arith.constant 0 : index
    %c0_1 = arith.constant 0 : index
    %0 = vector.load %arg1[%c0, %c0_0, %c0_1] : memref<2x288x12xf32, #tpu.memory_space<vmem>>, vector<1x256x12xf32>
    %1 = vector.shape_cast %0 : vector<1x256x12xf32> to vector<256x12xf32>
    %2 = arith.truncf %1 : vector<256x12xf32> to vector<256x12xbf16>
    %c0_2 = arith.constant 0 : index
    %c0_3 = arith.constant 0 : index
    %c0_4 = arith.constant 0 : index
    %3 = vector.load %arg2[%c0_2, %c0_3, %c0_4] : memref<3x12x128xf32, #tpu.memory_space<vmem>>, vector<1x12x128xf32>
    %4 = vector.shape_cast %3 : vector<1x12x128xf32> to vector<12x128xf32>
    %5 = arith.truncf %4 : vector<12x128xf32> to vector<12x128xbf16>
    %cst = arith.constant dense<0.000000e+00> : vector<256x128xf32>
    %6 = tpu.matmul %2, %5, %cst {dimension_numbers = #tpu.dot_dimension_numbers<[1], [0], [0], [1], [0, 0, 1, 1], [], []>} : vector<256x12xbf16>, vector<12x128xbf16>, vector<256x128xf32> -> vector<256x128xf32>
    %c0_5 = arith.constant 0 : index
    %c16 = arith.constant 16 : index
    %c0_6 = arith.constant 0 : index
    %7 = vector.load %arg1[%c0_5, %c16, %c0_6] : memref<2x288x12xf32, #tpu.memory_space<vmem>>, vector<1x256x12xf32>
    %8 = vector.shape_cast %7 : vector<1x256x12xf32> to vector<256x12xf32>
    %9 = arith.truncf %8 : vector<256x12xf32> to vector<256x12xbf16>
    %c1 = arith.constant 1 : index
    %c0_7 = arith.constant 0 : index
    %c0_8 = arith.constant 0 : index
    %10 = vector.load %arg2[%c1, %c0_7, %c0_8] : memref<3x12x128xf32, #tpu.memory_space<vmem>>, vector<1x12x128xf32>
    %11 = vector.shape_cast %10 : vector<1x12x128xf32> to vector<12x128xf32>
    %12 = arith.truncf %11 : vector<12x128xf32> to vector<12x128xbf16>
    %cst_9 = arith.constant dense<0.000000e+00> : vector<256x128xf32>
    %13 = tpu.matmul %9, %12, %cst_9 {dimension_numbers = #tpu.dot_dimension_numbers<[1], [0], [0], [1], [0, 0, 1, 1], [], []>} : vector<256x12xbf16>, vector<12x128xbf16>, vector<256x128xf32> -> vector<256x128xf32>
    %14 = arith.addf %6, %13 : vector<256x128xf32>
    %c0_10 = arith.constant 0 : index
    %c32 = arith.constant 32 : index
    %c0_11 = arith.constant 0 : index
    %15 = vector.load %arg1[%c0_10, %c32, %c0_11] : memref<2x288x12xf32, #tpu.memory_space<vmem>>, vector<1x256x12xf32>
    %16 = vector.shape_cast %15 : vector<1x256x12xf32> to vector<256x12xf32>
    %17 = arith.truncf %16 : vector<256x12xf32> to vector<256x12xbf16>
    %c2 = arith.constant 2 : index
    %c0_12 = arith.constant 0 : index
    %c0_13 = arith.constant 0 : index
    %18 = vector.load %arg2[%c2, %c0_12, %c0_13] : memref<3x12x128xf32, #tpu.memory_space<vmem>>, vector<1x12x128xf32>
    %19 = vector.shape_cast %18 : vector<1x12x128xf32> to vector<12x128xf32>
    %20 = arith.truncf %19 : vector<12x128xf32> to vector<12x128xbf16>
    %cst_14 = arith.constant dense<0.000000e+00> : vector<256x128xf32>
    %21 = tpu.matmul %17, %20, %cst_14 {dimension_numbers = #tpu.dot_dimension_numbers<[1], [0], [0], [1], [0, 0, 1, 1], [], []>} : vector<256x12xbf16>, vector<12x128xbf16>, vector<256x128xf32> -> vector<256x128xf32>
    %22 = arith.addf %14, %21 : vector<256x128xf32>
    %cst_15 = arith.constant 0.000000e+00 : f32
    %23 = vector.broadcast %cst_15 : f32 to vector<256x128xf32>
    %24 = arith.maximumf %22, %23 : vector<256x128xf32>
    %25 = tpu.transpose %24, [1, 0] : vector<256x128xf32> -> vector<128x256xf32>
    %c0_16 = arith.constant 0 : index
    %c0_17 = arith.constant 0 : index
    %c0_18 = arith.constant 0 : index
    %26 = vector.load %arg3[%c0_16, %c0_17, %c0_18] : memref<2x128x256xf32, #tpu.memory_space<vmem>>, vector<1x128x256xf32>
    %27 = vector.shape_cast %26 : vector<1x128x256xf32> to vector<128x256xf32>
    %28 = vector.shape_cast %25 : vector<128x256xf32> to vector<1x128x256xf32>
    tpu.vector_store %arg3[%c0_16, %c0_17, %c0_18], %28 {strides = array<i32>} : memref<2x128x256xf32, #tpu.memory_space<vmem>>, vector<1x128x256xf32>,
    %c1_19 = arith.constant 1 : index
    %c0_20 = arith.constant 0 : index
    %c0_21 = arith.constant 0 : index
    %29 = vector.load %arg1[%c1_19, %c0_20, %c0_21] : memref<2x288x12xf32, #tpu.memory_space<vmem>>, vector<1x256x12xf32>
    %30 = vector.shape_cast %29 : vector<1x256x12xf32> to vector<256x12xf32>
    %31 = arith.truncf %30 : vector<256x12xf32> to vector<256x12xbf16>
    %c0_22 = arith.constant 0 : index
    %c0_23 = arith.constant 0 : index
    %c0_24 = arith.constant 0 : index
    %32 = vector.load %arg2[%c0_22, %c0_23, %c0_24] : memref<3x12x128xf32, #tpu.memory_space<vmem>>, vector<1x12x128xf32>
    %33 = vector.shape_cast %32 : vector<1x12x128xf32> to vector<12x128xf32>
    %34 = arith.truncf %33 : vector<12x128xf32> to vector<12x128xbf16>
    %cst_25 = arith.constant dense<0.000000e+00> : vector<256x128xf32>
    %35 = tpu.matmul %31, %34, %cst_25 {dimension_numbers = #tpu.dot_dimension_numbers<[1], [0], [0], [1], [0, 0, 1, 1], [], []>} : vector<256x12xbf16>, vector<12x128xbf16>, vector<256x128xf32> -> vector<256x128xf32>
    %c1_26 = arith.constant 1 : index
    %c16_27 = arith.constant 16 : index
    %c0_28 = arith.constant 0 : index
    %36 = vector.load %arg1[%c1_26, %c16_27, %c0_28] : memref<2x288x12xf32, #tpu.memory_space<vmem>>, vector<1x256x12xf32>
    %37 = vector.shape_cast %36 : vector<1x256x12xf32> to vector<256x12xf32>
    %38 = arith.truncf %37 : vector<256x12xf32> to vector<256x12xbf16>
    %c1_29 = arith.constant 1 : index
    %c0_30 = arith.constant 0 : index
    %c0_31 = arith.constant 0 : index
    %39 = vector.load %arg2[%c1_29, %c0_30, %c0_31] : memref<3x12x128xf32, #tpu.memory_space<vmem>>, vector<1x12x128xf32>
    %40 = vector.shape_cast %39 : vector<1x12x128xf32> to vector<12x128xf32>
    %41 = arith.truncf %40 : vector<12x128xf32> to vector<12x128xbf16>
    %cst_32 = arith.constant dense<0.000000e+00> : vector<256x128xf32>
    %42 = tpu.matmul %38, %41, %cst_32 {dimension_numbers = #tpu.dot_dimension_numbers<[1], [0], [0], [1], [0, 0, 1, 1], [], []>} : vector<256x12xbf16>, vector<12x128xbf16>, vector<256x128xf32> -> vector<256x128xf32>
    %43 = arith.addf %35, %42 : vector<256x128xf32>
    %c1_33 = arith.constant 1 : index
    %c32_34 = arith.constant 32 : index
    %c0_35 = arith.constant 0 : index
    %44 = vector.load %arg1[%c1_33, %c32_34, %c0_35] : memref<2x288x12xf32, #tpu.memory_space<vmem>>, vector<1x256x12xf32>
    %45 = vector.shape_cast %44 : vector<1x256x12xf32> to vector<256x12xf32>
    %46 = arith.truncf %45 : vector<256x12xf32> to vector<256x12xbf16>
    %c2_36 = arith.constant 2 : index
    %c0_37 = arith.constant 0 : index
    %c0_38 = arith.constant 0 : index
    %47 = vector.load %arg2[%c2_36, %c0_37, %c0_38] : memref<3x12x128xf32, #tpu.memory_space<vmem>>, vector<1x12x128xf32>
    %48 = vector.shape_cast %47 : vector<1x12x128xf32> to vector<12x128xf32>
    %49 = arith.truncf %48 : vector<12x128xf32> to vector<12x128xbf16>
    %cst_39 = arith.constant dense<0.000000e+00> : vector<256x128xf32>
    %50 = tpu.matmul %46, %49, %cst_39 {dimension_numbers = #tpu.dot_dimension_numbers<[1], [0], [0], [1], [0, 0, 1, 1], [], []>} : vector<256x12xbf16>, vector<12x128xbf16>, vector<256x128xf32> -> vector<256x128xf32>
    %51 = arith.addf %43, %50 : vector<256x128xf32>
    %cst_40 = arith.constant 0.000000e+00 : f32
    %52 = vector.broadcast %cst_40 : f32 to vector<256x128xf32>
    %53 = arith.maximumf %51, %52 : vector<256x128xf32>
    %54 = tpu.transpose %53, [1, 0] : vector<256x128xf32> -> vector<128x256xf32>
    %c1_41 = arith.constant 1 : index
    %c0_42 = arith.constant 0 : index
    %c0_43 = arith.constant 0 : index
    %55 = vector.load %arg3[%c1_41, %c0_42, %c0_43] : memref<2x128x256xf32, #tpu.memory_space<vmem>>, vector<1x128x256xf32>
    %56 = vector.shape_cast %55 : vector<1x128x256xf32> to vector<128x256xf32>
    %57 = vector.shape_cast %54 : vector<128x256xf32> to vector<1x128x256xf32>
    tpu.vector_store %arg3[%c1_41, %c0_42, %c0_43], %57 {strides = array<i32>} : memref<2x128x256xf32, #tpu.memory_space<vmem>>, vector<1x128x256xf32>,
    return
  }
  func.func @transform_0(%arg0: i32) -> (i32, i32, i32) {
    %c0_i32 = arith.constant 0 : i32
    %c0_i32_0 = arith.constant 0 : i32
    %c0_i32_1 = arith.constant 0 : i32
    %c0_i32_2 = arith.constant 0 : i32
    return %c0_i32, %c0_i32_0, %c0_i32_1 : i32, i32, i32
  }
  func.func @transform_1(%arg0: i32) -> (i32, i32, i32) {
    %c0_i32 = arith.constant 0 : i32
    %c0_i32_0 = arith.constant 0 : i32
    %c0_i32_1 = arith.constant 0 : i32
    %c0_i32_2 = arith.constant 0 : i32
    return %c0_i32, %c0_i32_0, %c0_i32_1 : i32, i32, i32
  }
  func.func @transform_2(%arg0: i32) -> (i32, i32, i32) {
    %c0_i32 = arith.constant 0 : i32
    %c0_i32_0 = arith.constant 0 : i32
    %c0_i32_1 = arith.constant 0 : i32
    %c0_i32_2 = arith.constant 0 : i32
    return %c0_i32, %c0_i32_0, %c0_i32_1 : i32, i32, i32
  }
}

</mosaic_0001>

<llo_original>
// kernel: conv_circular_relu.1
$region0: #{conv_circular_relu.1}
  #allocation0 [shape = 'u32[]', space=smem, size = 0x4, offset = 0x4, fixed_abs, tag = 'smem constant byte address 0x4 - core index']
  #allocation1 [shape = 'u32[144,128]{1,0:T(1,128)}', space=vmem, size = 0x12000, scoped, tag = 'internal scratch']
  %s0 = inlined_call_operand.vmem [shape: f32[2,288,12], index: 0, kind: input, shape index: {}]
  %s1 = inlined_call_operand.vmem [shape: f32[3,12,128], index: 1, kind: input, shape index: {}]
  %s2 = inlined_call_operand.vmem [shape: f32[2,128,256], index: 2, kind: output, shape index: {}]
  %s3 = sld [smem:[#allocation0]]
  $region18: #{conv_circular_relu.1} parent=0
    _
  %s5 = ssub.s32 1, %s3
  %s6 = scalar_select 0, %s5, %s3
  // Predicated region
  $region2: #{conv_circular_relu.1} parent=0 // pred_check
    _
  $region3: #{conv_circular_relu.1} parent=0 // pred_check_branch
    %8 = sbr.rel (0) target = $region5
  $region4: #{conv_circular_relu.1} parent=0 // pred_region
    _
  $region5: #{conv_circular_relu.1} parent=0 // pred_fallthru
    _
  // Predicated region
  $region6: #{conv_circular_relu.1} parent=0 // pred_check
    _
  $region7: #{conv_circular_relu.1} parent=0 // pred_check_branch
    %10 = sbr.rel (0) target = $region9
  $region8: #{conv_circular_relu.1} parent=0 // pred_region
    _
  $region9: #{conv_circular_relu.1} parent=0 // pred_fallthru
    _
  %v12 = vld [vmem:[%s0] sm:$0xff]
  %v13 = vld [vmem:[%s0 + $0x8] sm:$0xff]
  %v14 = vld [vmem:[%s0 + $0x10] sm:$0xff]
  %v15 = vld [vmem:[%s0 + $0x18] sm:$0xff]
  %v16 = vld [vmem:[%s0 + $0x20] sm:$0xff]
  %v17 = vld [vmem:[%s0 + $0x28] sm:$0xff]
  %v18 = vld [vmem:[%s0 + $0x30] sm:$0xff]
  %v19 = vld [vmem:[%s0 + $0x38] sm:$0xff]
  %v20 = vld [vmem:[%s0 + $0x40] sm:$0xff]
  %v21 = vld [vmem:[%s0 + $0x48] sm:$0xff]
  %v22 = vld [vmem:[%s0 + $0x50] sm:$0xff]
  %v23 = vld [vmem:[%s0 + $0x58] sm:$0xff]
  %v24 = vld [vmem:[%s0 + $0x60] sm:$0xff]
  %v25 = vld [vmem:[%s0 + $0x68] sm:$0xff]
  %v26 = vld [vmem:[%s0 + $0x70] sm:$0xff]
  %v27 = vld [vmem:[%s0 + $0x78] sm:$0xff]
  %v28 = vld [vmem:[%s0 + $0x80] sm:$0xff]
  %v29 = vld [vmem:[%s0 + $0x88] sm:$0xff]
  %v30 = vld [vmem:[%s0 + $0x90] sm:$0xff]
  %v31 = vld [vmem:[%s0 + $0x98] sm:$0xff]
  %v32 = vld [vmem:[%s0 + $0xa0] sm:$0xff]
  %v33 = vld [vmem:[%s0 + $0xa8] sm:$0xff]
  %v34 = vld [vmem:[%s0 + $0xb0] sm:$0xff]
  %v35 = vld [vmem:[%s0 + $0xb8] sm:$0xff]
  %v36 = vld [vmem:[%s0 + $0xc0] sm:$0xff]
  %v37 = vld [vmem:[%s0 + $0xc8] sm:$0xff]
  %v38 = vld [vmem:[%s0 + $0xd0] sm:$0xff]
  %v39 = vld [vmem:[%s0 + $0xd8] sm:$0xff]
  %v40 = vld [vmem:[%s0 + $0xe0] sm:$0xff]
  %v41 = vld [vmem:[%s0 + $0xe8] sm:$0xff]
  %v42 = vld [vmem:[%s0 + $0xf0] sm:$0xff]
  %v43 = vld [vmem:[%s0 + $0xf8] sm:$0xff]
  %v44 = vpack.c.bf16 %v13, %v12
  %v45 = vpack.c.bf16 %v15, %v14
  %v46 = vpack.c.bf16 %v17, %v16
  %v47 = vpack.c.bf16 %v19, %v18
  %v48 = vpack.c.bf16 %v21, %v20
  %v49 = vpack.c.bf16 %v23, %v22
  %v50 = vpack.c.bf16 %v25, %v24
  %v51 = vpack.c.bf16 %v27, %v26
  %v52 = vpack.c.bf16 %v29, %v28
  %v53 = vpack.c.bf16 %v31, %v30
  %v54 = vpack.c.bf16 %v33, %v32
  %v55 = vpack.c.bf16 %v35, %v34
  %v56 = vpack.c.bf16 %v37, %v36
  %v57 = vpack.c.bf16 %v39, %v38
  %v58 = vpack.c.bf16 %v41, %v40
  %v59 = vpack.c.bf16 %v43, %v42
  %v60 = vld [vmem:[%s1] sm:$0xff]
  %v61 = vld [vmem:[%s1 + $0x8] sm:$0xf]
  %v62 = vpack.c.bf16 %v61, %v60
  %v63 = vld [vmem:[%s0 + $0x100] sm:$0xff]
  %v64 = vld [vmem:[%s0 + $0x108] sm:$0xff]
  %v65 = vpack.c.bf16 %v64, %v63
  %s66 = scalar_lea.vmem %s1, 16
  %v67 = vld [vmem:[%s66] sm:$0xff]
  %v68 = vld [vmem:[%s66 + $0x8] sm:$0xf]
  %v69 = vpack.c.bf16 %v68, %v67
  %vm70 = vcmask 97280
  %v72 = vsel %vm70, %v45, 0
  %v75 = vsel %vm70, %v46, 0
  %v78 = vsel %vm70, %v47, 0
  %v81 = vsel %vm70, %v48, 0
  %v84 = vsel %vm70, %v49, 0
  %v87 = vsel %vm70, %v50, 0
  %v90 = vsel %vm70, %v51, 0
  %v93 = vsel %vm70, %v52, 0
  %v96 = vsel %vm70, %v53, 0
  %v99 = vsel %vm70, %v54, 0
  %v102 = vsel %vm70, %v55, 0
  %v105 = vsel %vm70, %v56, 0
  %v108 = vsel %vm70, %v57, 0
  %v111 = vsel %vm70, %v58, 0
  %v114 = vsel %vm70, %v59, 0
  %v117 = vsel %vm70, %v65, 0
  %vm119 = vcmask 1045504
  %v121 = vsel %vm119, %v69, 0
  %123 = vmatprep.subr.bf16.mxu0 0
  %124 = vmatpush1.bf16.msra.mxu0 %v121
  %125 = vmatprep.subr.bf16.mxu0 0
  %126 = vmatpush1.bf16.msra.mxu0 0
  %127 = vmatprep.subr.bf16.mxu0 0
  %128 = vmatpush1.bf16.msra.mxu0 0
  %129 = vmatprep.subr.bf16.mxu0 0
  %130 = vmatpush1.bf16.msra.mxu0 0
  %131 = vmatprep.subr.bf16.mxu0 0
  %132 = vmatpush1.bf16.msra.mxu0 0
  %133 = vmatprep.subr.bf16.mxu0 0
  %134 = vmatpush1.bf16.msra.mxu0 0
  %135 = vmatprep.subr.bf16.mxu0 0
  %136 = vmatpush1.bf16.msra.mxu0 0
  %137 = vmatprep.subr.bf16.mxu0 0
  %138 = vmatpush1.bf16.msra.mxu0 0
  %139 = vmatprep.subr.bf16.mxu0 0
  %140 = vmatpush1.bf16.msra.mxu0 0
  %141 = vmatprep.subr.bf16.mxu0 0
  %142 = vmatpush1.bf16.msra.mxu0 0
  %143 = vmatprep.subr.bf16.mxu0 0
  %144 = vmatpush1.bf16.msra.mxu0 0
  %145 = vmatprep.subr.bf16.mxu0 0
  %146 = vmatpush1.bf16.msra.mxu0 0
  %147 = vmatprep.subr.bf16.mxu0 0
  %148 = vmatpush1.bf16.msra.mxu0 0
  %149 = vmatprep.subr.bf16.mxu0 0
  %150 = vmatpush1.bf16.msra.mxu0 0
  %151 = vmatprep.subr.bf16.mxu0 0
  %152 = vmatpush1.bf16.msra.mxu0 0
  %153 = vmatprep.subr.bf16.mxu0 0
  %154 = vmatpush1.bf16.msra.mxu0 0
  %155 = vmatprep.mubr.bf16.mxu0 0
  %156 = vmatmul.mubr.bf16.gmra.mrb[0].mxu0 %v72
  %v157 = vpop.f32.mrb[0].mxu0
  %v158 = vadd.f32 0.0, %v157
  %v159 = vpop.f32.mrb[0].mxu0
  %v160 = vpop.f32.mrb[0].mxu0
  %v161 = vadd.f32 0.0, %v160
  %v162 = vpop.f32.mrb[0].mxu0
  %163 = vmatprep.mubr.bf16.mxu0 0
  %164 = vmatmul.mubr.bf16.gmra.mrb[0].mxu0 %v75
  %v165 = vpop.f32.mrb[0].mxu0
  %v166 = vadd.f32 0.0, %v165
  %v167 = vpop.f32.mrb[0].mxu0
  %v168 = vpop.f32.mrb[0].mxu0
  %v169 = vadd.f32 0.0, %v168
  %v170 = vpop.f32.mrb[0].mxu0
  %171 = vmatprep.mubr.bf16.mxu0 0
  %172 = vmatmul.mubr.bf16.gmra.mrb[0].mxu0 %v78
  %v173 = vpop.f32.mrb[0].mxu0
  %v174 = vadd.f32 0.0, %v173
  %v175 = vpop.f32.mrb[0].mxu0
  %v176 = vpop.f32.mrb[0].mxu0
  %v177 = vadd.f32 0.0, %v176
  %v178 = vpop.f32.mrb[0].mxu0
  %179 = vmatprep.mubr.bf16.mxu0 0
  %180 = vmatmul.mubr.bf16.gmra.mrb[0].mxu0 %v81
  %v181 = vpop.f32.mrb[0].mxu0
  %v182 = vadd.f32 0.0, %v181
  %v183 = vpop.f32.mrb[0].mxu0
  %v184 = vpop.f32.mrb[0].mxu0
  %v185 = vadd.f32 0.0, %v184
  %v186 = vpop.f32.mrb[0].mxu0
  %187 = vmatprep.mubr.bf16.mxu0 0
  %188 = vmatmul.mubr.bf16.gmra.mrb[0].mxu0 %v84
  %v189 = vpop.f32.mrb[0].mxu0
  %v190 = vadd.f32 0.0, %v189
  %v191 = vpop.f32.mrb[0].mxu0
  %v192 = vpop.f32.mrb[0].mxu0
  %v193 = vadd.f32 0.0, %v192
  %v194 = vpop.f32.mrb[0].mxu0
  %195 = vmatprep.mubr.bf16.mxu0 0
  %196 = vmatmul.mubr.bf16.gmra.mrb[0].mxu0 %v87
  %v197 = vpop.f32.mrb[0].mxu0
  %v198 = vadd.f32 0.0, %v197
  %v199 = vpop.f32.mrb[0].mxu0
  %v200 = vpop.f32.mrb[0].mxu0
  %v201 = vadd.f32 0.0, %v200
  %v202 = vpop.f32.mrb[0].mxu0
  %203 = vmatprep.mubr.bf16.mxu0 0
  %204 = vmatmul.mubr.bf16.gmra.mrb[0].mxu0 %v90
  %v205 = vpop.f32.mrb[0].mxu0
  %v206 = vadd.f32 0.0, %v205
  %v207 = vpop.f32.mrb[0].mxu0
  %v208 = vpop.f32.mrb[0].mxu0
  %v209 = vadd.f32 0.0, %v208
  %v210 = vpop.f32.mrb[0].mxu0
  %211 = vmatprep.mubr.bf16.mxu0 0
  %212 = vmatmul.mubr.bf16.gmra.mrb[0].mxu0 %v93
  %v213 = vpop.f32.mrb[0].mxu0
  %v214 = vadd.f32 0.0, %v213
  %v215 = vpop.f32.mrb[0].mxu0
  %v216 = vpop.f32.mrb[0].mxu0
  %v217 = vadd.f32 0.0, %v216
  %v218 = vpop.f32.mrb[0].mxu0
  %219 = vmatprep.mubr.bf16.mxu0 0
  %220 = vmatmul.mubr.bf16.gmra.mrb[0].mxu0 %v96
  %v221 = vpop.f32.mrb[0].mxu0
  %v222 = vadd.f32 0.0, %v221
  %v223 = vpop.f32.mrb[0].mxu0
  %v224 = vpop.f32.mrb[0].mxu0
  %v225 = vadd.f32 0.0, %v224
  %v226 = vpop.f32.mrb[0].mxu0
  %227 = vmatprep.mubr.bf16.mxu0 0
  %228 = vmatmul.mubr.bf16.gmra.mrb[0].mxu0 %v99
  %v229 = vpop.f32.mrb[0].mxu0
  %v230 = vadd.f32 0.0, %v229
  %v231 = vpop.f32.mrb[0].mxu0
  %v232 = vpop.f32.mrb[0].mxu0
  %v233 = vadd.f32 0.0, %v232
  %v234 = vpop.f32.mrb[0].mxu0
  %235 = vmatprep.mubr.bf16.mxu0 0
  %236 = vmatmul.mubr.bf16.gmra.mrb[0].mxu0 %v102
  %v237 = vpop.f32.mrb[0].mxu0
  %v238 = vadd.f32 0.0, %v237
  %v239 = vpop.f32.mrb[0].mxu0
  %v240 = vpop.f32.mrb[0].mxu0
  %v241 = vadd.f32 0.0, %v240
  %v242 = vpop.f32.mrb[0].mxu0
  %243 = vmatprep.mubr.bf16.mxu0 0
  %244 = vmatmul.mubr.bf16.gmra.mrb[0].mxu0 %v105
  %v245 = vpop.f32.mrb[0].mxu0
  %v246 = vadd.f32 0.0, %v245
  %v247 = vpop.f32.mrb[0].mxu0
  %v248 = vpop.f32.mrb[0].mxu0
  %v249 = vadd.f32 0.0, %v248
  %v250 = vpop.f32.mrb[0].mxu0
  %251 = vmatprep.mubr.bf16.mxu0 0
  %252 = vmatmul.mubr.bf16.gmra.mrb[0].mxu0 %v108
  %v253 = vpop.f32.mrb[0].mxu0
  %v254 = vadd.f32 0.0, %v253
  %v255 = vpop.f32.mrb[0].mxu0
  %v256 = vpop.f32.mrb[0].mxu0
  %v257 = vadd.f32 0.0, %v256
  %v258 = vpop.f32.mrb[0].mxu0
  %259 = vmatprep.mubr.bf16.mxu0 0
  %260 = vmatmul.mubr.bf16.gmra.mrb[0].mxu0 %v111
  %v261 = vpop.f32.mrb[0].mxu0
  %v262 = vadd.f32 0.0, %v261
  %v263 = vpop.f32.mrb[0].mxu0
  %v264 = vpop.f32.mrb[0].mxu0
  %v265 = vadd.f32 0.0, %v264
  %v266 = vpop.f32.mrb[0].mxu0
  %267 = vmatprep.mubr.bf16.mxu0 0
  %268 = vmatmul.mubr.bf16.gmra.mrb[0].mxu0 %v114
  %v269 = vpop.f32.mrb[0].mxu0
  %v270 = vadd.f32 0.0, %v269
  %v271 = vpop.f32.mrb[0].mxu0
  %v272 = vpop.f32.mrb[0].mxu0
  %v273 = vadd.f32 0.0, %v272
  %v274 = vpop.f32.mrb[0].mxu0
  %275 = vmatprep.mubr.bf16.mxu0 0
  %276 = vmatmul.mubr.bf16.gmra.mrb[0].mxu0 %v117
  %v277 = vpop.f32.mrb[0].mxu0
  %v278 = vadd.f32 0.0, %v277
  %v279 = vpop.f32.mrb[0].mxu0
  %v280 = vpop.f32.mrb[0].mxu0
  %v281 = vadd.f32 0.0, %v280
  %v282 = vpop.f32.mrb[0].mxu0
  %283 = vdwg.mxu0
  %v285 = vsel %vm70, %v44, 0
  %v288 = vsel %vm119, %v62, 0
  %290 = vmatprep.subr.bf16.mxu0 0
  %291 = vmatpush1.bf16.msra.mxu0 %v288
  %292 = vmatprep.subr.bf16.mxu0 0
  %293 = vmatpush1.bf16.msra.mxu0 0
  %294 = vmatprep.subr.bf16.mxu0 0
  %295 = vmatpush1.bf16.msra.mxu0 0
  %296 = vmatprep.subr.bf16.mxu0 0
  %297 = vmatpush1.bf16.msra.mxu0 0
  %298 = vmatprep.subr.bf16.mxu0 0
  %299 = vmatpush1.bf16.msra.mxu0 0
  %300 = vmatprep.subr.bf16.mxu0 0
  %301 = vmatpush1.bf16.msra.mxu0 0
  %302 = vmatprep.subr.bf16.mxu0 0
  %303 = vmatpush1.bf16.msra.mxu0 0
  %304 = vmatprep.subr.bf16.mxu0 0
  %305 = vmatpush1.bf16.msra.mxu0 0
  %306 = vmatprep.subr.bf16.mxu0 0
  %307 = vmatpush1.bf16.msra.mxu0 0
  %308 = vmatprep.subr.bf16.mxu0 0
  %309 = vmatpush1.bf16.msra.mxu0 0
  %310 = vmatprep.subr.bf16.mxu0 0
  %311 = vmatpush1.bf16.msra.mxu0 0
  %312 = vmatprep.subr.bf16.mxu0 0
  %313 = vmatpush1.bf16.msra.mxu0 0
  %314 = vmatprep.subr.bf16.mxu0 0
  %315 = vmatpush1.bf16.msra.mxu0 0
  %316 = vmatprep.subr.bf16.mxu0 0
  %317 = vmatpush1.bf16.msra.mxu0 0
  %318 = vmatprep.subr.bf16.mxu0 0
  %319 = vmatpush1.bf16.msra.mxu0 0
  %320 = vmatprep.subr.bf16.mxu0 0
  %321 = vmatpush1.bf16.msra.mxu0 0
  %322 = vmatprep.mubr.bf16.mxu0 0
  %323 = vmatmul.mubr.bf16.gmra.mrb[0].mxu0 %v285
  %v324 = vpop.f32.mrb[0].mxu0
  %v325 = vadd.f32 %v158, %v324
  %v326 = vpop.f32.mrb[0].mxu0
  %v327 = vpop.f32.mrb[0].mxu0
  %v328 = vadd.f32 %v161, %v327
  %v329 = vpop.f32.mrb[0].mxu0
  %330 = vmatprep.mubr.bf16.mxu0 0
  %331 = vmatmul.mubr.bf16.gmra.mrb[0].mxu0 %v72
  %v332 = vpop.f32.mrb[0].mxu0
  %v333 = vadd.f32 %v166, %v332
  %v334 = vpop.f32.mrb[0].mxu0
  %v335 = vpop.f32.mrb[0].mxu0
  %v336 = vadd.f32 %v169, %v335
  %v337 = vpop.f32.mrb[0].mxu0
  %338 = vmatprep.mubr.bf16.mxu0 0
  %339 = vmatmul.mubr.bf16.gmra.mrb[0].mxu0 %v75
  %v340 = vpop.f32.mrb[0].mxu0
  %v341 = vadd.f32 %v174, %v340
  %v342 = vpop.f32.mrb[0].mxu0
  %v343 = vpop.f32.mrb[0].mxu0
  %v344 = vadd.f32 %v177, %v343
  %v345 = vpop.f32.mrb[0].mxu0
  %346 = vmatprep.mubr.bf16.mxu0 0
  %347 = vmatmul.mubr.bf16.gmra.mrb[0].mxu0 %v78
  %v348 = vpop.f32.mrb[0].mxu0
  %v349 = vadd.f32 %v182, %v348
  %v350 = vpop.f32.mrb[0].mxu0
  %v351 = vpop.f32.mrb[0].mxu0
  %v352 = vadd.f32 %v185, %v351
  %v353 = vpop.f32.mrb[0].mxu0
  %354 = vmatprep.mubr.bf16.mxu0 0
  %355 = vmatmul.mubr.bf16.gmra.mrb[0].mxu0 %v81
  %v356 = vpop.f32.mrb[0].mxu0
  %v357 = vadd.f32 %v190, %v356
  %v358 = vpop.f32.mrb[0].mxu0
  %v359 = vpop.f32.mrb[0].mxu0
  %v360 = vadd.f32 %v193, %v359
  %v361 = vpop.f32.mrb[0].mxu0
  %362 = vmatprep.mubr.bf16.mxu0 0
  %363 = vmatmul.mubr.bf16.gmra.mrb[0].mxu0 %v84
  %v364 = vpop.f32.mrb[0].mxu0
  %v365 = vadd.f32 %v198, %v364
  %v366 = vpop.f32.mrb[0].mxu0
  %v367 = vpop.f32.mrb[0].mxu0
  %v368 = vadd.f32 %v201, %v367
  %v369 = vpop.f32.mrb[0].mxu0
  %370 = vmatprep.mubr.bf16.mxu0 0
  %371 = vmatmul.mubr.bf16.gmra.mrb[0].mxu0 %v87
  %v372 = vpop.f32.mrb[0].mxu0
  %v373 = vadd.f32 %v206, %v372
  %v374 = vpop.f32.mrb[0].mxu0
  %v375 = vpop.f32.mrb[0].mxu0
  %v376 = vadd.f32 %v209, %v375
  %v377 = vpop.f32.mrb[0].mxu0
  %378 = vmatprep.mubr.bf16.mxu0 0
  %379 = vmatmul.mubr.bf16.gmra.mrb[0].mxu0 %v90
  %v380 = vpop.f32.mrb[0].mxu0
  %v381 = vadd.f32 %v214, %v380
  %v382 = vpop.f32.mrb[0].mxu0
  %v383 = vpop.f32.mrb[0].mxu0
  %v384 = vadd.f32 %v217, %v383
  %v385 = vpop.f32.mrb[0].mxu0
  %386 = vmatprep.mubr.bf16.mxu0 0
  %387 = vmatmul.mubr.bf16.gmra.mrb[0].mxu0 %v93
  %v388 = vpop.f32.mrb[0].mxu0
  %v389 = vadd.f32 %v222, %v388
  %v390 = vpop.f32.mrb[0].mxu0
  %v391 = vpop.f32.mrb[0].mxu0
  %v392 = vadd.f32 %v225, %v391
  %v393 = vpop.f32.mrb[0].mxu0
  %394 = vmatprep.mubr.bf16.mxu0 0
  %395 = vmatmul.mubr.bf16.gmra.mrb[0].mxu0 %v96
  %v396 = vpop.f32.mrb[0].mxu0
  %v397 = vadd.f32 %v230, %v396
  %v398 = vpop.f32.mrb[0].mxu0
  %v399 = vpop.f32.mrb[0].mxu0
  %v400 = vadd.f32 %v233, %v399
  %v401 = vpop.f32.mrb[0].mxu0
  %402 = vmatprep.mubr.bf16.mxu0 0
  %403 = vmatmul.mubr.bf16.gmra.mrb[0].mxu0 %v99
  %v404 = vpop.f32.mrb[0].mxu0
  %v405 = vadd.f32 %v238, %v404
  %v406 = vpop.f32.mrb[0].mxu0
  %v407 = vpop.f32.mrb[0].mxu0
  %v408 = vadd.f32 %v241, %v407
  %v409 = vpop.f32.mrb[0].mxu0
  %410 = vmatprep.mubr.bf16.mxu0 0
  %411 = vmatmul.mubr.bf16.gmra.mrb[0].mxu0 %v102
  %v412 = vpop.f32.mrb[0].mxu0
  %v413 = vadd.f32 %v246, %v412
  %v414 = vpop.f32.mrb[0].mxu0
  %v415 = vpop.f32.mrb[0].mxu0
  %v416 = vadd.f32 %v249, %v415
  %v417 = vpop.f32.mrb[0].mxu0
  %418 = vmatprep.mubr.bf16.mxu0 0
  %419 = vmatmul.mubr.bf16.gmra.mrb[0].mxu0 %v105
  %v420 = vpop.f32.mrb[0].mxu0
  %v421 = vadd.f32 %v254, %v420
  %v422 = vpop.f32.mrb[0].mxu0
  %v423 = vpop.f32.mrb[0].mxu0
  %v424 = vadd.f32 %v257, %v423
  %v425 = vpop.f32.mrb[0].mxu0
  %426 = vmatprep.mubr.bf16.mxu0 0
  %427 = vmatmul.mubr.bf16.gmra.mrb[0].mxu0 %v108
  %v428 = vpop.f32.mrb[0].mxu0
  %v429 = vadd.f32 %v262, %v428
  %v430 = vpop.f32.mrb[0].mxu0
  %v431 = vpop.f32.mrb[0].mxu0
  %v432 = vadd.f32 %v265, %v431
  %v433 = vpop.f32.mrb[0].mxu0
  %434 = vmatprep.mubr.bf16.mxu0 0
  %435 = vmatmul.mubr.bf16.gmra.mrb[0].mxu0 %v111
  %v436 = vpop.f32.mrb[0].mxu0
  %v437 = vadd.f32 %v270, %v436
  %v438 = vpop.f32.mrb[0].mxu0
  %v439 = vpop.f32.mrb[0].mxu0
  %v440 = vadd.f32 %v273, %v439
  %v441 = vpop.f32.mrb[0].mxu0
  %442 = vmatprep.mubr.bf16.mxu0 0
  %443 = vmatmul.mubr.bf16.gmra.mrb[0].mxu0 %v114
  %v444 = vpop.f32.mrb[0].mxu0
  %v445 = vadd.f32 %v278, %v444
  %v446 = vpop.f32.mrb[0].mxu0
  %v447 = vpop.f32.mrb[0].mxu0
  %v448 = vadd.f32 %v281, %v447
  %v449 = vpop.f32.mrb[0].mxu0
  %450 = vdwg.mxu0
  %v451 = vld [vmem:[%s0 + $0x20] sm:$0xff]
  %v452 = vld [vmem:[%s0 + $0x28] sm:$0xff]
  %v453 = vld [vmem:[%s0 + $0x30] sm:$0xff]
  %v454 = vld [vmem:[%s0 + $0x38] sm:$0xff]
  %v455 = vld [vmem:[%s0 + $0x40] sm:$0xff]
  %v456 = vld [vmem:[%s0 + $0x48] sm:$0xff]
  %v457 = vld [vmem:[%s0 + $0x50] sm:$0xff]
  %v458 = vld [vmem:[%s0 + $0x58] sm:$0xff]
  %v459 = vld [vmem:[%s0 + $0x60] sm:$0xff]
  %v460 = vld [vmem:[%s0 + $0x68] sm:$0xff]
  %v461 = vld [vmem:[%s0 + $0x70] sm:$0xff]
  %v462 = vld [vmem:[%s0 + $0x78] sm:$0xff]
  %v463 = vld [vmem:[%s0 + $0x80] sm:$0xff]
  %v464 = vld [vmem:[%s0 + $0x88] sm:$0xff]
  %v465 = vld [vmem:[%s0 + $0x90] sm:$0xff]
  %v466 = vld [vmem:[%s0 + $0x98] sm:$0xff]
  %v467 = vld [vmem:[%s0 + $0xa0] sm:$0xff]
  %v468 = vld [vmem:[%s0 + $0xa8] sm:$0xff]
  %v469 = vld [vmem:[%s0 + $0xb0] sm:$0xff]
  %v470 = vld [vmem:[%s0 + $0xb8] sm:$0xff]
  %v471 = vld [vmem:[%s0 + $0xc0] sm:$0xff]
  %v472 = vld [vmem:[%s0 + $0xc8] sm:$0xff]
  %v473 = vld [vmem:[%s0 + $0xd0] sm:$0xff]
  %v474 = vld [vmem:[%s0 + $0xd8] sm:$0xff]
  %v475 = vld [vmem:[%s0 + $0xe0] sm:$0xff]
  %v476 = vld [vmem:[%s0 + $0xe8] sm:$0xff]
  %v477 = vld [vmem:[%s0 + $0xf0] sm:$0xff]
  %v478 = vld [vmem:[%s0 + $0xf8] sm:$0xff]
  %v479 = vld [vmem:[%s0 + $0x100] sm:$0xff]
  %v480 = vld [vmem:[%s0 + $0x108] sm:$0xff]
  %v481 = vld [vmem:[%s0 + $0x110] sm:$0xff]
  %v482 = vld [vmem:[%s0 + $0x118] sm:$0xff]
  %v483 = vpack.c.bf16 %v452, %v451
  %v484 = vpack.c.bf16 %v454, %v453
  %v485 = vpack.c.bf16 %v456, %v455
  %v486 = vpack.c.bf16 %v458, %v457
  %v487 = vpack.c.bf16 %v460, %v459
  %v488 = vpack.c.bf16 %v462, %v461
  %v489 = vpack.c.bf16 %v464, %v463
  %v490 = vpack.c.bf16 %v466, %v465
  %v491 = vpack.c.bf16 %v468, %v467
  %v492 = vpack.c.bf16 %v470, %v469
  %v493 = vpack.c.bf16 %v472, %v471
  %v494 = vpack.c.bf16 %v474, %v473
  %v495 = vpack.c.bf16 %v476, %v475
  %v496 = vpack.c.bf16 %v478, %v477
  %v497 = vpack.c.bf16 %v480, %v479
  %v498 = vpack.c.bf16 %v482, %v481
  %s499 = scalar_lea.vmem %s1, 32
  %v500 = vld [vmem:[%s499] sm:$0xff]
  %v501 = vld [vmem:[%s499 + $0x8] sm:$0xf]
  %v502 = vpack.c.bf16 %v501, %v500
  %v504 = vsel %vm70, %v483, 0
  %v507 = vsel %vm70, %v484, 0
  %v510 = vsel %vm70, %v485, 0
  %v513 = vsel %vm70, %v486, 0
  %v516 = vsel %vm70, %v487, 0
  %v519 = vsel %vm70, %v488, 0
  %v522 = vsel %vm70, %v489, 0
  %v525 = vsel %vm70, %v490, 0
  %v528 = vsel %vm70, %v491, 0
  %v531 = vsel %vm70, %v492, 0
  %v534 = vsel %vm70, %v493, 0
  %v537 = vsel %vm70, %v494, 0
  %v540 = vsel %vm70, %v495, 0
  %v543 = vsel %vm70, %v496, 0
  %v546 = vsel %vm70, %v497, 0
  %v549 = vsel %vm70, %v498, 0
  %v552 = vsel %vm119, %v502, 0
  %554 = vmatprep.subr.bf16.mxu0 0
  %555 = vmatpush1.bf16.msra.mxu0 %v552
  %556 = vmatprep.subr.bf16.mxu0 0
  %557 = vmatpush1.bf16.msra.mxu0 0
  %558 = vmatprep.subr.bf16.mxu0 0
  %559 = vmatpush1.bf16.msra.mxu0 0
  %560 = vmatprep.subr.bf16.mxu0 0
  %561 = vmatpush1.bf16.msra.mxu0 0
  %562 = vmatprep.subr.bf16.mxu0 0
  %563 = vmatpush1.bf16.msra.mxu0 0
  %564 = vmatprep.subr.bf16.mxu0 0
  %565 = vmatpush1.bf16.msra.mxu0 0
  %566 = vmatprep.subr.bf16.mxu0 0
  %567 = vmatpush1.bf16.msra.mxu0 0
  %568 = vmatprep.subr.bf16.mxu0 0
  %569 = vmatpush1.bf16.msra.mxu0 0
  %570 = vmatprep.subr.bf16.mxu0 0
  %571 = vmatpush1.bf16.msra.mxu0 0
  %572 = vmatprep.subr.bf16.mxu0 0
  %573 = vmatpush1.bf16.msra.mxu0 0
  %574 = vmatprep.subr.bf16.mxu0 0
  %575 = vmatpush1.bf16.msra.mxu0 0
  %576 = vmatprep.subr.bf16.mxu0 0
  %577 = vmatpush1.bf16.msra.mxu0 0
  %578 = vmatprep.subr.bf16.mxu0 0
  %579 = vmatpush1.bf16.msra.mxu0 0
  %580 = vmatprep.subr.bf16.mxu0 0
  %581 = vmatpush1.bf16.msra.mxu0 0
  %582 = vmatprep.subr.bf16.mxu0 0
  %583 = vmatpush1.bf16.msra.mxu0 0
  %584 = vmatprep.subr.bf16.mxu0 0
  %585 = vmatpush1.bf16.msra.mxu0 0
  %586 = vmatprep.mubr.bf16.mxu0 0
  %587 = vmatmul.mubr.bf16.gmra.mrb[0].mxu0 %v504
  %v588 = vpop.f32.mrb[0].mxu0
  %v589 = vadd.f32 0.0, %v588
  %v590 = vpop.f32.mrb[0].mxu0
  %v591 = vpop.f32.mrb[0].mxu0
  %v592 = vadd.f32 0.0, %v591
  %v593 = vpop.f32.mrb[0].mxu0
  %594 = vmatprep.mubr.bf16.mxu0 0
  %595 = vmatmul.mubr.bf16.gmra.mrb[0].mxu0 %v507
  %v596 = vpop.f32.mrb[0].mxu0
  %v597 = vadd.f32 0.0, %v596
  %v598 = vpop.f32.mrb[0].mxu0
  %v599 = vpop.f32.mrb[0].mxu0
  %v600 = vadd.f32 0.0, %v599
  %v601 = vpop.f32.mrb[0].mxu0
  %602 = vmatprep.mubr.bf16.mxu0 0
  %603 = vmatmul.mubr.bf16.gmra.mrb[0].mxu0 %v510
  %v604 = vpop.f32.mrb[0].mxu0
  %v605 = vadd.f32 0.0, %v604
  %v606 = vpop.f32.mrb[0].mxu0
  %v607 = vpop.f32.mrb[0].mxu0
  %v608 = vadd.f32 0.0, %v607
  %v609 = vpop.f32.mrb[0].mxu0
  %610 = vmatprep.mubr.bf16.mxu0 0
  %611 = vmatmul.mubr.bf16.gmra.mrb[0].mxu0 %v513
  %v612 = vpop.f32.mrb[0].mxu0
  %v613 = vadd.f32 0.0, %v612
  %v614 = vpop.f32.mrb[0].mxu0
  %v615 = vpop.f32.mrb[0].mxu0
  %v616 = vadd.f32 0.0, %v615
  %v617 = vpop.f32.mrb[0].mxu0
  %618 = vmatprep.mubr.bf16.mxu0 0
  %619 = vmatmul.mubr.bf16.gmra.mrb[0].mxu0 %v516
  %v620 = vpop.f32.mrb[0].mxu0
  %v621 = vadd.f32 0.0, %v620
  %v622 = vpop.f32.mrb[0].mxu0
  %v623 = vpop.f32.mrb[0].mxu0
  %v624 = vadd.f32 0.0, %v623
  %v625 = vpop.f32.mrb[0].mxu0
  %626 = vmatprep.mubr.bf16.mxu0 0
  %627 = vmatmul.mubr.bf16.gmra.mrb[0].mxu0 %v519
  %v628 = vpop.f32.mrb[0].mxu0
  %v629 = vadd.f32 0.0, %v628
  %v630 = vpop.f32.mrb[0].mxu0
  %v631 = vpop.f32.mrb[0].mxu0
  %v632 = vadd.f32 0.0, %v631
  %v633 = vpop.f32.mrb[0].mxu0
  %634 = vmatprep.mubr.bf16.mxu0 0
  %635 = vmatmul.mubr.bf16.gmra.mrb[0].mxu0 %v522
  %v636 = vpop.f32.mrb[0].mxu0
  %v637 = vadd.f32 0.0, %v636
  %v638 = vpop.f32.mrb[0].mxu0
  %v639 = vpop.f32.mrb[0].mxu0
  %v640 = vadd.f32 0.0, %v639
  %v641 = vpop.f32.mrb[0].mxu0
  %642 = vmatprep.mubr.bf16.mxu0 0
  %643 = vmatmul.mubr.bf16.gmra.mrb[0].mxu0 %v525
  %v644 = vpop.f32.mrb[0].mxu0
  %v645 = vadd.f32 0.0, %v644
  %v646 = vpop.f32.mrb[0].mxu0
  %v647 = vpop.f32.mrb[0].mxu0
  %v648 = vadd.f32 0.0, %v647
  %v649 = vpop.f32.mrb[0].mxu0
  %650 = vmatprep.mubr.bf16.mxu0 0
  %651 = vmatmul.mubr.bf16.gmra.mrb[0].mxu0 %v528
  %v652 = vpop.f32.mrb[0].mxu0
  %v653 = vadd.f32 0.0, %v652
  %v654 = vpop.f32.mrb[0].mxu0
  %v655 = vpop.f32.mrb[0].mxu0
  %v656 = vadd.f32 0.0, %v655
  %v657 = vpop.f32.mrb[0].mxu0
  %658 = vmatprep.mubr.bf16.mxu0 0
  %659 = vmatmul.mubr.bf16.gmra.mrb[0].mxu0 %v531
  %v660 = vpop.f32.mrb[0].mxu0
  %v661 = vadd.f32 0.0, %v660
  %v662 = vpop.f32.mrb[0].mxu0
  %v663 = vpop.f32.mrb[0].mxu0
  %v664 = vadd.f32 0.0, %v663
  %v665 = vpop.f32.mrb[0].mxu0
  %666 = vmatprep.mubr.bf16.mxu0 0
  %667 = vmatmul.mubr.bf16.gmra.mrb[0].mxu0 %v534
  %v668 = vpop.f32.mrb[0].mxu0
  %v669 = vadd.f32 0.0, %v668
  %v670 = vpop.f32.mrb[0].mxu0
  %v671 = vpop.f32.mrb[0].mxu0
  %v672 = vadd.f32 0.0, %v671
  %v673 = vpop.f32.mrb[0].mxu0
  %674 = vmatprep.mubr.bf16.mxu0 0
  %675 = vmatmul.mubr.bf16.gmra.mrb[0].mxu0 %v537
  %v676 = vpop.f32.mrb[0].mxu0
  %v677 = vadd.f32 0.0, %v676
  %v678 = vpop.f32.mrb[0].mxu0
  %v679 = vpop.f32.mrb[0].mxu0
  %v680 = vadd.f32 0.0, %v679
  %v681 = vpop.f32.mrb[0].mxu0
  %682 = vmatprep.mubr.bf16.mxu0 0
  %683 = vmatmul.mubr.bf16.gmra.mrb[0].mxu0 %v540
  %v684 = vpop.f32.mrb[0].mxu0
  %v685 = vadd.f32 0.0, %v684
  %v686 = vpop.f32.mrb[0].mxu0
  %v687 = vpop.f32.mrb[0].mxu0
  %v688 = vadd.f32 0.0, %v687
  %v689 = vpop.f32.mrb[0].mxu0
  %690 = vmatprep.mubr.bf16.mxu0 0
  %691 = vmatmul.mubr.bf16.gmra.mrb[0].mxu0 %v543
  %v692 = vpop.f32.mrb[0].mxu0
  %v693 = vadd.f32 0.0, %v692
  %v694 = vpop.f32.mrb[0].mxu0
  %v695 = vpop.f32.mrb[0].mxu0
  %v696 = vadd.f32 0.0, %v695
  %v697 = vpop.f32.mrb[0].mxu0
  %698 = vmatprep.mubr.bf16.mxu0 0
  %699 = vmatmul.mubr.bf16.gmra.mrb[0].mxu0 %v546
  %v700 = vpop.f32.mrb[0].mxu0
  %v701 = vadd.f32 0.0, %v700
  %v702 = vpop.f32.mrb[0].mxu0
  %v703 = vpop.f32.mrb[0].mxu0
  %v704 = vadd.f32 0.0, %v703
  %v705 = vpop.f32.mrb[0].mxu0
  %706 = vmatprep.mubr.bf16.mxu0 0
  %707 = vmatmul.mubr.bf16.gmra.mrb[0].mxu0 %v549
  %v708 = vpop.f32.mrb[0].mxu0
  %v709 = vadd.f32 0.0, %v708
  %v710 = vpop.f32.mrb[0].mxu0
  %v711 = vpop.f32.mrb[0].mxu0
  %v712 = vadd.f32 0.0, %v711
  %v713 = vpop.f32.mrb[0].mxu0
  %714 = vdwg.mxu0
  %v715 = vadd.f32 %v325, %v589
  %v716 = vadd.f32 %v328, %v592
  %v717 = vadd.f32 %v333, %v597
  %v718 = vadd.f32 %v336, %v600
  %v719 = vadd.f32 %v341, %v605
  %v720 = vadd.f32 %v344, %v608
  %v721 = vadd.f32 %v349, %v613
  %v722 = vadd.f32 %v352, %v616
  %v723 = vadd.f32 %v357, %v621
  %v724 = vadd.f32 %v360, %v624
  %v725 = vadd.f32 %v365, %v629
  %v726 = vadd.f32 %v368, %v632
  %v727 = vadd.f32 %v373, %v637
  %v728 = vadd.f32 %v376, %v640
  %v729 = vadd.f32 %v381, %v645
  %v730 = vadd.f32 %v384, %v648
  %v731 = vadd.f32 %v389, %v653
  %v732 = vadd.f32 %v392, %v656
  %v733 = vadd.f32 %v397, %v661
  %v734 = vadd.f32 %v400, %v664
  %v735 = vadd.f32 %v405, %v669
  %v736 = vadd.f32 %v408, %v672
  %v737 = vadd.f32 %v413, %v677
  %v738 = vadd.f32 %v416, %v680
  %v739 = vadd.f32 %v421, %v685
  %v740 = vadd.f32 %v424, %v688
  %v741 = vadd.f32 %v429, %v693
  %v742 = vadd.f32 %v432, %v696
  %v743 = vadd.f32 %v437, %v701
  %v744 = vadd.f32 %v440, %v704
  %v745 = vadd.f32 %v445, %v709
  %v746 = vadd.f32 %v448, %v712
  %v747 = vmax.f32 %v715, 0.0
  %v748 = vmax.f32 %v716, 0.0
  %v749 = vmax.f32 %v717, 0.0
  %v750 = vmax.f32 %v718, 0.0
  %v751 = vmax.f32 %v719, 0.0
  %v752 = vmax.f32 %v720, 0.0
  %v753 = vmax.f32 %v721, 0.0
  %v754 = vmax.f32 %v722, 0.0
  %v755 = vmax.f32 %v723, 0.0
  %v756 = vmax.f32 %v724, 0.0
  %v757 = vmax.f32 %v725, 0.0
  %v758 = vmax.f32 %v726, 0.0
  %v759 = vmax.f32 %v727, 0.0
  %v760 = vmax.f32 %v728, 0.0
  %v761 = vmax.f32 %v729, 0.0
  %v762 = vmax.f32 %v730, 0.0
  %v763 = vmax.f32 %v731, 0.0
  %v764 = vmax.f32 %v732, 0.0
  %v765 = vmax.f32 %v733, 0.0
  %v766 = vmax.f32 %v734, 0.0
  %v767 = vmax.f32 %v735, 0.0
  %v768 = vmax.f32 %v736, 0.0
  %v769 = vmax.f32 %v737, 0.0
  %v770 = vmax.f32 %v738, 0.0
  %v771 = vmax.f32 %v739, 0.0
  %v772 = vmax.f32 %v740, 0.0
  %v773 = vmax.f32 %v741, 0.0
  %v774 = vmax.f32 %v742, 0.0
  %v775 = vmax.f32 %v743, 0.0
  %v776 = vmax.f32 %v744, 0.0
  %v777 = vmax.f32 %v745, 0.0
  %v778 = vmax.f32 %v746, 0.0
  %779 = vxpose.xlu0.b32.start [1/16] %v747, 128
  %780 = vxpose.xlu0.b32.cont [2/16] %v748, 128
  %781 = vxpose.xlu0.b32.cont [3/16] %v749, 128
  %782 = vxpose.xlu0.b32.cont [4/16] %v750, 128
  %783 = vxpose.xlu0.b32.cont [5/16] %v751, 128
  %784 = vxpose.xlu0.b32.cont [6/16] %v752, 128
  %785 = vxpose.xlu0.b32.cont [7/16] %v753, 128
  %786 = vxpose.xlu0.b32.cont [8/16] %v754, 128
  %787 = vxpose.xlu0.b32.cont [9/16] %v755, 128
  %788 = vxpose.xlu0.b32.cont [10/16] %v756, 128
  %789 = vxpose.xlu0.b32.cont [11/16] %v757, 128
  %790 = vxpose.xlu0.b32.cont [12/16] %v758, 128
  %791 = vxpose.xlu0.b32.cont [13/16] %v759, 128
  %792 = vxpose.xlu0.b32.cont [14/16] %v760, 128
  %793 = vxpose.xlu0.b32.cont [15/16] %v761, 128
  %794 = vxpose.xlu0.b32.end [16/16] %v762, 128
  %v795 = vpop.trf.xlu0
  %v796 = vpop.trf.xlu0
  %v797 = vpop.trf.xlu0
  %v798 = vpop.trf.xlu0
  %v799 = vpop.trf.xlu0
  %v800 = vpop.trf.xlu0
  %v801 = vpop.trf.xlu0
  %v802 = vpop.trf.xlu0
  %v803 = vpop.trf.xlu0
  %v804 = vpop.trf.xlu0
  %v805 = vpop.trf.xlu0
  %v806 = vpop.trf.xlu0
  %v807 = vpop.trf.xlu0
  %v808 = vpop.trf.xlu0
  %v809 = vpop.trf.xlu0
  %v810 = vpop.trf.xlu0
  %811 = vxpose.xlu0.b32.start [1/16] %v763, 128
  %812 = vxpose.xlu0.b32.cont [2/16] %v764, 128
  %813 = vxpose.xlu0.b32.cont [3/16] %v765, 128
  %814 = vxpose.xlu0.b32.cont [4/16] %v766, 128
  %815 = vxpose.xlu0.b32.cont [5/16] %v767, 128
  %816 = vxpose.xlu0.b32.cont [6/16] %v768, 128
  %817 = vxpose.xlu0.b32.cont [7/16] %v769, 128
  %818 = vxpose.xlu0.b32.cont [8/16] %v770, 128
  %819 = vxpose.xlu0.b32.cont [9/16] %v771, 128
  %820 = vxpose.xlu0.b32.cont [10/16] %v772, 128
  %821 = vxpose.xlu0.b32.cont [11/16] %v773, 128
  %822 = vxpose.xlu0.b32.cont [12/16] %v774, 128
  %823 = vxpose.xlu0.b32.cont [13/16] %v775, 128
  %824 = vxpose.xlu0.b32.cont [14/16] %v776, 128
  %825 = vxpose.xlu0.b32.cont [15/16] %v777, 128
  %826 = vxpose.xlu0.b32.end [16/16] %v778, 128
  %v827 = vpop.trf.xlu0
  %v828 = vpop.trf.xlu0
  %v829 = vpop.trf.xlu0
  %v830 = vpop.trf.xlu0
  %v831 = vpop.trf.xlu0
  %v832 = vpop.trf.xlu0
  %v833 = vpop.trf.xlu0
  %v834 = vpop.trf.xlu0
  %v835 = vpop.trf.xlu0
  %v836 = vpop.trf.xlu0
  %v837 = vpop.trf.xlu0
  %v838 = vpop.trf.xlu0
  %v839 = vpop.trf.xlu0
  %v840 = vpop.trf.xlu0
  %v841 = vpop.trf.xlu0
  %v842 = vpop.trf.xlu0
  %843 = vst [vmem:[%s2] sm:$0xff] %v795
  %844 = vst [vmem:[%s2 + $0x8] sm:$0xff] %v827
  %845 = vst [vmem:[%s2 + $0x10] sm:$0xff] %v796
  %846 = vst [vmem:[%s2 + $0x18] sm:$0xff] %v828
  %847 = vst [vmem:[%s2 + $0x20] sm:$0xff] %v797
  %848 = vst [vmem:[%s2 + $0x28] sm:$0xff] %v829
  %849 = vst [vmem:[%s2 + $0x30] sm:$0xff] %v798
  %850 = vst [vmem:[%s2 + $0x38] sm:$0xff] %v830
  %851 = vst [vmem:[%s2 + $0x40] sm:$0xff] %v799
  %852 = vst [vmem:[%s2 + $0x48] sm:$0xff] %v831
  %853 = vst [vmem:[%s2 + $0x50] sm:$0xff] %v800
  %854 = vst [vmem:[%s2 + $0x58] sm:$0xff] %v832
  %855 = vst [vmem:[%s2 + $0x60] sm:$0xff] %v801
  %856 = vst [vmem:[%s2 + $0x68] sm:$0xff] %v833
  %857 = vst [vmem:[%s2 + $0x70] sm:$0xff] %v802
  %858 = vst [vmem:[%s2 + $0x78] sm:$0xff] %v834
  %859 = vst [vmem:[%s2 + $0x80] sm:$0xff] %v803
  %860 = vst [vmem:[%s2 + $0x88] sm:$0xff] %v835
  %861 = vst [vmem:[%s2 + $0x90] sm:$0xff] %v804
  %862 = vst [vmem:[%s2 + $0x98] sm:$0xff] %v836
  %863 = vst [vmem:[%s2 + $0xa0] sm:$0xff] %v805
  %864 = vst [vmem:[%s2 + $0xa8] sm:$0xff] %v837
  %865 = vst [vmem:[%s2 + $0xb0] sm:$0xff] %v806
  %866 = vst [vmem:[%s2 + $0xb8] sm:$0xff] %v838
  %867 = vst [vmem:[%s2 + $0xc0] sm:$0xff] %v807
  %868 = vst [vmem:[%s2 + $0xc8] sm:$0xff] %v839
  %869 = vst [vmem:[%s2 + $0xd0] sm:$0xff] %v808
  %870 = vst [vmem:[%s2 + $0xd8] sm:$0xff] %v840
  %871 = vst [vmem:[%s2 + $0xe0] sm:$0xff] %v809
  %872 = vst [vmem:[%s2 + $0xe8] sm:$0xff] %v841
  %873 = vst [vmem:[%s2 + $0xf0] sm:$0xff] %v810
  %874 = vst [vmem:[%s2 + $0xf8] sm:$0xff] %v842
  %s875 = scalar_lea.vmem %s0, 288
  %v876 = vld [vmem:[%s875] sm:$0xff]
  %v877 = vld [vmem:[%s875 + $0x8] sm:$0xff]
  %v878 = vld [vmem:[%s875 + $0x10] sm:$0xff]
  %v879 = vld [vmem:[%s875 + $0x18] sm:$0xff]
  %v880 = vld [vmem:[%s875 + $0x20] sm:$0xff]
  %v881 = vld [vmem:[%s875 + $0x28] sm:$0xff]
  %v882 = vld [vmem:[%s875 + $0x30] sm:$0xff]
  %v883 = vld [vmem:[%s875 + $0x38] sm:$0xff]
  %v884 = vld [vmem:[%s875 + $0x40] sm:$0xff]
  %v885 = vld [vmem:[%s875 + $0x48] sm:$0xff]
  %v886 = vld [vmem:[%s875 + $0x50] sm:$0xff]
  %v887 = vld [vmem:[%s875 + $0x58] sm:$0xff]
  %v888 = vld [vmem:[%s875 + $0x60] sm:$0xff]
  %v889 = vld [vmem:[%s875 + $0x68] sm:$0xff]
  %v890 = vld [vmem:[%s875 + $0x70] sm:$0xff]
  %v891 = vld [vmem:[%s875 + $0x78] sm:$0xff]
  %v892 = vld [vmem:[%s875 + $0x80] sm:$0xff]
  %v893 = vld [vmem:[%s875 + $0x88] sm:$0xff]
  %v894 = vld [vmem:[%s875 + $0x90] sm:$0xff]
  %v895 = vld [vmem:[%s875 + $0x98] sm:$0xff]
  %v896 = vld [vmem:[%s875 + $0xa0] sm:$0xff]
  %v897 = vld [vmem:[%s875 + $0xa8] sm:$0xff]
  %v898 = vld [vmem:[%s875 + $0xb0] sm:$0xff]
  %v899 = vld [vmem:[%s875 + $0xb8] sm:$0xff]
  %v900 = vld [vmem:[%s875 + $0xc0] sm:$0xff]
  %v901 = vld [vmem:[%s875 + $0xc8] sm:$0xff]
  %v902 = vld [vmem:[%s875 + $0xd0] sm:$0xff]
  %v903 = vld [vmem:[%s875 + $0xd8] sm:$0xff]
  %v904 = vld [vmem:[%s875 + $0xe0] sm:$0xff]
  %v905 = vld [vmem:[%s875 + $0xe8] sm:$0xff]
  %v906 = vld [vmem:[%s875 + $0xf0] sm:$0xff]
  %v907 = vld [vmem:[%s875 + $0xf8] sm:$0xff]
  %v908 = vpack.c.bf16 %v877, %v876
  %v909 = vpack.c.bf16 %v879, %v878
  %v910 = vpack.c.bf16 %v881, %v880
  %v911 = vpack.c.bf16 %v883, %v882
  %v912 = vpack.c.bf16 %v885, %v884
  %v913 = vpack.c.bf16 %v887, %v886
  %v914 = vpack.c.bf16 %v889, %v888
  %v915 = vpack.c.bf16 %v891, %v890
  %v916 = vpack.c.bf16 %v893, %v892
  %v917 = vpack.c.bf16 %v895, %v894
  %v918 = vpack.c.bf16 %v897, %v896
  %v919 = vpack.c.bf16 %v899, %v898
  %v920 = vpack.c.bf16 %v901, %v900
  %v921 = vpack.c.bf16 %v903, %v902
  %v922 = vpack.c.bf16 %v905, %v904
  %v923 = vpack.c.bf16 %v907, %v906
  %v924 = vld [vmem:[%s1] sm:$0xff]
  %v925 = vld [vmem:[%s1 + $0x8] sm:$0xf]
  %v926 = vpack.c.bf16 %v925, %v924
  %v927 = vld [vmem:[%s875 + $0x100] sm:$0xff]
  %v928 = vld [vmem:[%s875 + $0x108] sm:$0xff]
  %v929 = vpack.c.bf16 %v928, %v927
  %v930 = vld [vmem:[%s66] sm:$0xff]
  %v931 = vld [vmem:[%s66 + $0x8] sm:$0xf]
  %v932 = vpack.c.bf16 %v931, %v930
  %v934 = vsel %vm70, %v909, 0
  %v937 = vsel %vm70, %v910, 0
  %v940 = vsel %vm70, %v911, 0
  %v943 = vsel %vm70, %v912, 0
  %v946 = vsel %vm70, %v913, 0
  %v949 = vsel %vm70, %v914, 0
  %v952 = vsel %vm70, %v915, 0
  %v955 = vsel %vm70, %v916, 0
  %v958 = vsel %vm70, %v917, 0
  %v961 = vsel %vm70, %v918, 0
  %v964 = vsel %vm70, %v919, 0
  %v967 = vsel %vm70, %v920, 0
  %v970 = vsel %vm70, %v921, 0
  %v973 = vsel %vm70, %v922, 0
  %v976 = vsel %vm70, %v923, 0
  %v979 = vsel %vm70, %v929, 0
  %v982 = vsel %vm119, %v932, 0
  %984 = vmatprep.subr.bf16.mxu0 0
  %985 = vmatpush1.bf16.msra.mxu0 %v982
  %986 = vmatprep.subr.bf16.mxu0 0
  %987 = vmatpush1.bf16.msra.mxu0 0
  %988 = vmatprep.subr.bf16.mxu0 0
  %989 = vmatpush1.bf16.msra.mxu0 0
  %990 = vmatprep.subr.bf16.mxu0 0
  %991 = vmatpush1.bf16.msra.mxu0 0
  %992 = vmatprep.subr.bf16.mxu0 0
  %993 = vmatpush1.bf16.msra.mxu0 0
  %994 = vmatprep.subr.bf16.mxu0 0
  %995 = vmatpush1.bf16.msra.mxu0 0
  %996 = vmatprep.subr.bf16.mxu0 0
  %997 = vmatpush1.bf16.msra.mxu0 0
  %998 = vmatprep.subr.bf16.mxu0 0
  %999 = vmatpush1.bf16.msra.mxu0 0
  %1000 = vmatprep.subr.bf16.mxu0 0
  %1001 = vmatpush1.bf16.msra.mxu0 0
  %1002 = vmatprep.subr.bf16.mxu0 0
  %1003 = vmatpush1.bf16.msra.mxu0 0
  %1004 = vmatprep.subr.bf16.mxu0 0
  %1005 = vmatpush1.bf16.msra.mxu0 0
  %1006 = vmatprep.subr.bf16.mxu0 0
  %1007 = vmatpush1.bf16.msra.mxu0 0
  %1008 = vmatprep.subr.bf16.mxu0 0
  %1009 = vmatpush1.bf16.msra.mxu0 0
  %1010 = vmatprep.subr.bf16.mxu0 0
  %1011 = vmatpush1.bf16.msra.mxu0 0
  %1012 = vmatprep.subr.bf16.mxu0 0
  %1013 = vmatpush1.bf16.msra.mxu0 0
  %1014 = vmatprep.subr.bf16.mxu0 0
  %1015 = vmatpush1.bf16.msra.mxu0 0
  %1016 = vmatprep.mubr.bf16.mxu0 0
  %1017 = vmatmul.mubr.bf16.gmra.mrb[0].mxu0 %v934
  %v1018 = vpop.f32.mrb[0].mxu0
  %v1019 = vadd.f32 0.0, %v1018
  %v1020 = vpop.f32.mrb[0].mxu0
  %v1021 = vpop.f32.mrb[0].mxu0
  %v1022 = vadd.f32 0.0, %v1021
  %v1023 = vpop.f32.mrb[0].mxu0
  %1024 = vmatprep.mubr.bf16.mxu0 0
  %1025 = vmatmul.mubr.bf16.gmra.mrb[0].mxu0 %v937
  %v1026 = vpop.f32.mrb[0].mxu0
  %v1027 = vadd.f32 0.0, %v1026
  %v1028 = vpop.f32.mrb[0].mxu0
  %v1029 = vpop.f32.mrb[0].mxu0
  %v1030 = vadd.f32 0.0, %v1029
  %v1031 = vpop.f32.mrb[0].mxu0
  %1032 = vmatprep.mubr.bf16.mxu0 0
  %1033 = vmatmul.mubr.bf16.gmra.mrb[0].mxu0 %v940
  %v1034 = vpop.f32.mrb[0].mxu0
  %v1035 = vadd.f32 0.0, %v1034
  %v1036 = vpop.f32.mrb[0].mxu0
  %v1037 = vpop.f32.mrb[0].mxu0
  %v1038 = vadd.f32 0.0, %v1037
  %v1039 = vpop.f32.mrb[0].mxu0
  %1040 = vmatprep.mubr.bf16.mxu0 0
  %1041 = vmatmul.mubr.bf16.gmra.mrb[0].mxu0 %v943
  %v1042 = vpop.f32.mrb[0].mxu0
  %v1043 = vadd.f32 0.0, %v1042
  %v1044 = vpop.f32.mrb[0].mxu0
  %v1045 = vpop.f32.mrb[0].mxu0
  %v1046 = vadd.f32 0.0, %v1045
  %v1047 = vpop.f32.mrb[0].mxu0
  %1048 = vmatprep.mubr.bf16.mxu0 0
  %1049 = vmatmul.mubr.bf16.gmra.mrb[0].mxu0 %v946
  %v1050 = vpop.f32.mrb[0].mxu0
  %v1051 = vadd.f32 0.0, %v1050
  %v1052 = vpop.f32.mrb[0].mxu0
  %v1053 = vpop.f32.mrb[0].mxu0
  %v1054 = vadd.f32 0.0, %v1053
  %v1055 = vpop.f32.mrb[0].mxu0
  %1056 = vmatprep.mubr.bf16.mxu0 0
  %1057 = vmatmul.mubr.bf16.gmra.mrb[0].mxu0 %v949
  %v1058 = vpop.f32.mrb[0].mxu0
  %v1059 = vadd.f32 0.0, %v1058
  %v1060 = vpop.f32.mrb[0].mxu0
  %v1061 = vpop.f32.mrb[0].mxu0
  %v1062 = vadd.f32 0.0, %v1061
  %v1063 = vpop.f32.mrb[0].mxu0
  %1064 = vmatprep.mubr.bf16.mxu0 0
  %1065 = vmatmul.mubr.bf16.gmra.mrb[0].mxu0 %v952
  %v1066 = vpop.f32.mrb[0].mxu0
  %v1067 = vadd.f32 0.0, %v1066
  %v1068 = vpop.f32.mrb[0].mxu0
  %v1069 = vpop.f32.mrb[0].mxu0
  %v1070 = vadd.f32 0.0, %v1069
  %v1071 = vpop.f32.mrb[0].mxu0
  %1072 = vmatprep.mubr.bf16.mxu0 0
  %1073 = vmatmul.mubr.bf16.gmra.mrb[0].mxu0 %v955
  %v1074 = vpop.f32.mrb[0].mxu0
  %v1075 = vadd.f32 0.0, %v1074
  %v1076 = vpop.f32.mrb[0].mxu0
  %v1077 = vpop.f32.mrb[0].mxu0
  %v1078 = vadd.f32 0.0, %v1077
  %v1079 = vpop.f32.mrb[0].mxu0
  %1080 = vmatprep.mubr.bf16.mxu0 0
  %1081 = vmatmul.mubr.bf16.gmra.mrb[0].mxu0 %v958
  %v1082 = vpop.f32.mrb[0].mxu0
  %v1083 = vadd.f32 0.0, %v1082
  %v1084 = vpop.f32.mrb[0].mxu0
  %v1085 = vpop.f32.mrb[0].mxu0
  %v1086 = vadd.f32 0.0, %v1085
  %v1087 = vpop.f32.mrb[0].mxu0
  %1088 = vmatprep.mubr.bf16.mxu0 0
  %1089 = vmatmul.mubr.bf16.gmra.mrb[0].mxu0 %v961
  %v1090 = vpop.f32.mrb[0].mxu0
  %v1091 = vadd.f32 0.0, %v1090
  %v1092 = vpop.f32.mrb[0].mxu0
  %v1093 = vpop.f32.mrb[0].mxu0
  %v1094 = vadd.f32 0.0, %v1093
  %v1095 = vpop.f32.mrb[0].mxu0
  %1096 = vmatprep.mubr.bf16.mxu0 0
  %1097 = vmatmul.mubr.bf16.gmra.mrb[0].mxu0 %v964
  %v1098 = vpop.f32.mrb[0].mxu0
  %v1099 = vadd.f32 0.0, %v1098
  %v1100 = vpop.f32.mrb[0].mxu0
  %v1101 = vpop.f32.mrb[0].mxu0
  %v1102 = vadd.f32 0.0, %v1101
  %v1103 = vpop.f32.mrb[0].mxu0
  %1104 = vmatprep.mubr.bf16.mxu0 0
  %1105 = vmatmul.mubr.bf16.gmra.mrb[0].mxu0 %v967
  %v1106 = vpop.f32.mrb[0].mxu0
  %v1107 = vadd.f32 0.0, %v1106
  %v1108 = vpop.f32.mrb[0].mxu0
  %v1109 = vpop.f32.mrb[0].mxu0
  %v1110 = vadd.f32 0.0, %v1109
  %v1111 = vpop.f32.mrb[0].mxu0
  %1112 = vmatprep.mubr.bf16.mxu0 0
  %1113 = vmatmul.mubr.bf16.gmra.mrb[0].mxu0 %v970
  %v1114 = vpop.f32.mrb[0].mxu0
  %v1115 = vadd.f32 0.0, %v1114
  %v1116 = vpop.f32.mrb[0].mxu0
  %v1117 = vpop.f32.mrb[0].mxu0
  %v1118 = vadd.f32 0.0, %v1117
  %v1119 = vpop.f32.mrb[0].mxu0
  %1120 = vmatprep.mubr.bf16.mxu0 0
  %1121 = vmatmul.mubr.bf16.gmra.mrb[0].mxu0 %v973
  %v1122 = vpop.f32.mrb[0].mxu0
  %v1123 = vadd.f32 0.0, %v1122
  %v1124 = vpop.f32.mrb[0].mxu0
  %v1125 = vpop.f32.mrb[0].mxu0
  %v1126 = vadd.f32 0.0, %v1125
  %v1127 = vpop.f32.mrb[0].mxu0
  %1128 = vmatprep.mubr.bf16.mxu0 0
  %1129 = vmatmul.mubr.bf16.gmra.mrb[0].mxu0 %v976
  %v1130 = vpop.f32.mrb[0].mxu0
  %v1131 = vadd.f32 0.0, %v1130
  %v1132 = vpop.f32.mrb[0].mxu0
  %v1133 = vpop.f32.mrb[0].mxu0
  %v1134 = vadd.f32 0.0, %v1133
  %v1135 = vpop.f32.mrb[0].mxu0
  %1136 = vmatprep.mubr.bf16.mxu0 0
  %1137 = vmatmul.mubr.bf16.gmra.mrb[0].mxu0 %v979
  %v1138 = vpop.f32.mrb[0].mxu0
  %v1139 = vadd.f32 0.0, %v1138
  %v1140 = vpop.f32.mrb[0].mxu0
  %v1141 = vpop.f32.mrb[0].mxu0
  %v1142 = vadd.f32 0.0, %v1141
  %v1143 = vpop.f32.mrb[0].mxu0
  %1144 = vdwg.mxu0
  %v1146 = vsel %vm70, %v908, 0
  %v1149 = vsel %vm119, %v926, 0
  %1151 = vmatprep.subr.bf16.mxu0 0
  %1152 = vmatpush1.bf16.msra.mxu0 %v1149
  %1153 = vmatprep.subr.bf16.mxu0 0
  %1154 = vmatpush1.bf16.msra.mxu0 0
  %1155 = vmatprep.subr.bf16.mxu0 0
  %1156 = vmatpush1.bf16.msra.mxu0 0
  %1157 = vmatprep.subr.bf16.mxu0 0
  %1158 = vmatpush1.bf16.msra.mxu0 0
  %1159 = vmatprep.subr.bf16.mxu0 0
  %1160 = vmatpush1.bf16.msra.mxu0 0
  %1161 = vmatprep.subr.bf16.mxu0 0
  %1162 = vmatpush1.bf16.msra.mxu0 0
  %1163 = vmatprep.subr.bf16.mxu0 0
  %1164 = vmatpush1.bf16.msra.mxu0 0
  %1165 = vmatprep.subr.bf16.mxu0 0
  %1166 = vmatpush1.bf16.msra.mxu0 0
  %1167 = vmatprep.subr.bf16.mxu0 0
  %1168 = vmatpush1.bf16.msra.mxu0 0
  %1169 = vmatprep.subr.bf16.mxu0 0
  %1170 = vmatpush1.bf16.msra.mxu0 0
  %1171 = vmatprep.subr.bf16.mxu0 0
  %1172 = vmatpush1.bf16.msra.mxu0 0
  %1173 = vmatprep.subr.bf16.mxu0 0
  %1174 = vmatpush1.bf16.msra.mxu0 0
  %1175 = vmatprep.subr.bf16.mxu0 0
  %1176 = vmatpush1.bf16.msra.mxu0 0
  %1177 = vmatprep.subr.bf16.mxu0 0
  %1178 = vmatpush1.bf16.msra.mxu0 0
  %1179 = vmatprep.subr.bf16.mxu0 0
  %1180 = vmatpush1.bf16.msra.mxu0 0
  %1181 = vmatprep.subr.bf16.mxu0 0
  %1182 = vmatpush1.bf16.msra.mxu0 0
  %1183 = vmatprep.mubr.bf16.mxu0 0
  %1184 = vmatmul.mubr.bf16.gmra.mrb[0].mxu0 %v1146
  %v1185 = vpop.f32.mrb[0].mxu0
  %v1186 = vadd.f32 %v1019, %v1185
  %v1187 = vpop.f32.mrb[0].mxu0
  %v1188 = vpop.f32.mrb[0].mxu0
  %v1189 = vadd.f32 %v1022, %v1188
  %v1190 = vpop.f32.mrb[0].mxu0
  %1191 = vmatprep.mubr.bf16.mxu0 0
  %1192 = vmatmul.mubr.bf16.gmra.mrb[0].mxu0 %v934
  %v1193 = vpop.f32.mrb[0].mxu0
  %v1194 = vadd.f32 %v1027, %v1193
  %v1195 = vpop.f32.mrb[0].mxu0
  %v1196 = vpop.f32.mrb[0].mxu0
  %v1197 = vadd.f32 %v1030, %v1196
  %v1198 = vpop.f32.mrb[0].mxu0
  %1199 = vmatprep.mubr.bf16.mxu0 0
  %1200 = vmatmul.mubr.bf16.gmra.mrb[0].mxu0 %v937
  %v1201 = vpop.f32.mrb[0].mxu0
  %v1202 = vadd.f32 %v1035, %v1201
  %v1203 = vpop.f32.mrb[0].mxu0
  %v1204 = vpop.f32.mrb[0].mxu0
  %v1205 = vadd.f32 %v1038, %v1204
  %v1206 = vpop.f32.mrb[0].mxu0
  %1207 = vmatprep.mubr.bf16.mxu0 0
  %1208 = vmatmul.mubr.bf16.gmra.mrb[0].mxu0 %v940
  %v1209 = vpop.f32.mrb[0].mxu0
  %v1210 = vadd.f32 %v1043, %v1209
  %v1211 = vpop.f32.mrb[0].mxu0
  %v1212 = vpop.f32.mrb[0].mxu0
  %v1213 = vadd.f32 %v1046, %v1212
  %v1214 = vpop.f32.mrb[0].mxu0
  %1215 = vmatprep.mubr.bf16.mxu0 0
  %1216 = vmatmul.mubr.bf16.gmra.mrb[0].mxu0 %v943
  %v1217 = vpop.f32.mrb[0].mxu0
  %v1218 = vadd.f32 %v1051, %v1217
  %v1219 = vpop.f32.mrb[0].mxu0
  %v1220 = vpop.f32.mrb[0].mxu0
  %v1221 = vadd.f32 %v1054, %v1220
  %v1222 = vpop.f32.mrb[0].mxu0
  %1223 = vmatprep.mubr.bf16.mxu0 0
  %1224 = vmatmul.mubr.bf16.gmra.mrb[0].mxu0 %v946
  %v1225 = vpop.f32.mrb[0].mxu0
  %v1226 = vadd.f32 %v1059, %v1225
  %v1227 = vpop.f32.mrb[0].mxu0
  %v1228 = vpop.f32.mrb[0].mxu0
  %v1229 = vadd.f32 %v1062, %v1228
  %v1230 = vpop.f32.mrb[0].mxu0
  %1231 = vmatprep.mubr.bf16.mxu0 0
  %1232 = vmatmul.mubr.bf16.gmra.mrb[0].mxu0 %v949
  %v1233 = vpop.f32.mrb[0].mxu0
  %v1234 = vadd.f32 %v1067, %v1233
  %v1235 = vpop.f32.mrb[0].mxu0
  %v1236 = vpop.f32.mrb[0].mxu0
  %v1237 = vadd.f32 %v1070, %v1236
  %v1238 = vpop.f32.mrb[0].mxu0
  %1239 = vmatprep.mubr.bf16.mxu0 0
  %1240 = vmatmul.mubr.bf16.gmra.mrb[0].mxu0 %v952
  %v1241 = vpop.f32.mrb[0].mxu0
  %v1242 = vadd.f32 %v1075, %v1241
  %v1243 = vpop.f32.mrb[0].mxu0
  %v1244 = vpop.f32.mrb[0].mxu0
  %v1245 = vadd.f32 %v1078, %v1244
  %v1246 = vpop.f32.mrb[0].mxu0
  %1247 = vmatprep.mubr.bf16.mxu0 0
  %1248 = vmatmul.mubr.bf16.gmra.mrb[0].mxu0 %v955
  %v1249 = vpop.f32.mrb[0].mxu0
  %v1250 = vadd.f32 %v1083, %v1249
  %v1251 = vpop.f32.mrb[0].mxu0
  %v1252 = vpop.f32.mrb[0].mxu0
  %v1253 = vadd.f32 %v1086, %v1252
  %v1254 = vpop.f32.mrb[0].mxu0
  %1255 = vmatprep.mubr.bf16.mxu0 0
  %1256 = vmatmul.mubr.bf16.gmra.mrb[0].mxu0 %v958
  %v1257 = vpop.f32.mrb[0].mxu0
  %v1258 = vadd.f32 %v1091, %v1257
  %v1259 = vpop.f32.mrb[0].mxu0
  %v1260 = vpop.f32.mrb[0].mxu0
  %v1261 = vadd.f32 %v1094, %v1260
  %v1262 = vpop.f32.mrb[0].mxu0
  %1263 = vmatprep.mubr.bf16.mxu0 0
  %1264 = vmatmul.mubr.bf16.gmra.mrb[0].mxu0 %v961
  %v1265 = vpop.f32.mrb[0].mxu0
  %v1266 = vadd.f32 %v1099, %v1265
  %v1267 = vpop.f32.mrb[0].mxu0
  %v1268 = vpop.f32.mrb[0].mxu0
  %v1269 = vadd.f32 %v1102, %v1268
  %v1270 = vpop.f32.mrb[0].mxu0
  %1271 = vmatprep.mubr.bf16.mxu0 0
  %1272 = vmatmul.mubr.bf16.gmra.mrb[0].mxu0 %v964
  %v1273 = vpop.f32.mrb[0].mxu0
  %v1274 = vadd.f32 %v1107, %v1273
  %v1275 = vpop.f32.mrb[0].mxu0
  %v1276 = vpop.f32.mrb[0].mxu0
  %v1277 = vadd.f32 %v1110, %v1276
  %v1278 = vpop.f32.mrb[0].mxu0
  %1279 = vmatprep.mubr.bf16.mxu0 0
  %1280 = vmatmul.mubr.bf16.gmra.mrb[0].mxu0 %v967
  %v1281 = vpop.f32.mrb[0].mxu0
  %v1282 = vadd.f32 %v1115, %v1281
  %v1283 = vpop.f32.mrb[0].mxu0
  %v1284 = vpop.f32.mrb[0].mxu0
  %v1285 = vadd.f32 %v1118, %v1284
  %v1286 = vpop.f32.mrb[0].mxu0
  %1287 = vmatprep.mubr.bf16.mxu0 0
  %1288 = vmatmul.mubr.bf16.gmra.mrb[0].mxu0 %v970
  %v1289 = vpop.f32.mrb[0].mxu0
  %v1290 = vadd.f32 %v1123, %v1289
  %v1291 = vpop.f32.mrb[0].mxu0
  %v1292 = vpop.f32.mrb[0].mxu0
  %v1293 = vadd.f32 %v1126, %v1292
  %v1294 = vpop.f32.mrb[0].mxu0
  %1295 = vmatprep.mubr.bf16.mxu0 0
  %1296 = vmatmul.mubr.bf16.gmra.mrb[0].mxu0 %v973
  %v1297 = vpop.f32.mrb[0].mxu0
  %v1298 = vadd.f32 %v1131, %v1297
  %v1299 = vpop.f32.mrb[0].mxu0
  %v1300 = vpop.f32.mrb[0].mxu0
  %v1301 = vadd.f32 %v1134, %v1300
  %v1302 = vpop.f32.mrb[0].mxu0
  %1303 = vmatprep.mubr.bf16.mxu0 0
  %1304 = vmatmul.mubr.bf16.gmra.mrb[0].mxu0 %v976
  %v1305 = vpop.f32.mrb[0].mxu0
  %v1306 = vadd.f32 %v1139, %v1305
  %v1307 = vpop.f32.mrb[0].mxu0
  %v1308 = vpop.f32.mrb[0].mxu0
  %v1309 = vadd.f32 %v1142, %v1308
  %v1310 = vpop.f32.mrb[0].mxu0
  %1311 = vdwg.mxu0
  %v1312 = vld [vmem:[%s875 + $0x20] sm:$0xff]
  %v1313 = vld [vmem:[%s875 + $0x28] sm:$0xff]
  %v1314 = vld [vmem:[%s875 + $0x30] sm:$0xff]
  %v1315 = vld [vmem:[%s875 + $0x38] sm:$0xff]
  %v1316 = vld [vmem:[%s875 + $0x40] sm:$0xff]
  %v1317 = vld [vmem:[%s875 + $0x48] sm:$0xff]
  %v1318 = vld [vmem:[%s875 + $0x50] sm:$0xff]
  %v1319 = vld [vmem:[%s875 + $0x58] sm:$0xff]
  %v1320 = vld [vmem:[%s875 + $0x60] sm:$0xff]
  %v1321 = vld [vmem:[%s875 + $0x68] sm:$0xff]
  %v1322 = vld [vmem:[%s875 + $0x70] sm:$0xff]
  %v1323 = vld [vmem:[%s875 + $0x78] sm:$0xff]
  %v1324 = vld [vmem:[%s875 + $0x80] sm:$0xff]
  %v1325 = vld [vmem:[%s875 + $0x88] sm:$0xff]
  %v1326 = vld [vmem:[%s875 + $0x90] sm:$0xff]
  %v1327 = vld [vmem:[%s875 + $0x98] sm:$0xff]
  %v1328 = vld [vmem:[%s875 + $0xa0] sm:$0xff]
  %v1329 = vld [vmem:[%s875 + $0xa8] sm:$0xff]
  %v1330 = vld [vmem:[%s875 + $0xb0] sm:$0xff]
  %v1331 = vld [vmem:[%s875 + $0xb8] sm:$0xff]
  %v1332 = vld [vmem:[%s875 + $0xc0] sm:$0xff]
  %v1333 = vld [vmem:[%s875 + $0xc8] sm:$0xff]
  %v1334 = vld [vmem:[%s875 + $0xd0] sm:$0xff]
  %v1335 = vld [vmem:[%s875 + $0xd8] sm:$0xff]
  %v1336 = vld [vmem:[%s875 + $0xe0] sm:$0xff]
  %v1337 = vld [vmem:[%s875 + $0xe8] sm:$0xff]
  %v1338 = vld [vmem:[%s875 + $0xf0] sm:$0xff]
  %v1339 = vld [vmem:[%s875 + $0xf8] sm:$0xff]
  %v1340 = vld [vmem:[%s875 + $0x100] sm:$0xff]
  %v1341 = vld [vmem:[%s875 + $0x108] sm:$0xff]
  %v1342 = vld [vmem:[%s875 + $0x110] sm:$0xff]
  %v1343 = vld [vmem:[%s875 + $0x118] sm:$0xff]
  %v1344 = vpack.c.bf16 %v1313, %v1312
  %v1345 = vpack.c.bf16 %v1315, %v1314
  %v1346 = vpack.c.bf16 %v1317, %v1316
  %v1347 = vpack.c.bf16 %v1319, %v1318
  %v1348 = vpack.c.bf16 %v1321, %v1320
  %v1349 = vpack.c.bf16 %v1323, %v1322
  %v1350 = vpack.c.bf16 %v1325, %v1324
  %v1351 = vpack.c.bf16 %v1327, %v1326
  %v1352 = vpack.c.bf16 %v1329, %v1328
  %v1353 = vpack.c.bf16 %v1331, %v1330
  %v1354 = vpack.c.bf16 %v1333, %v1332
  %v1355 = vpack.c.bf16 %v1335, %v1334
  %v1356 = vpack.c.bf16 %v1337, %v1336
  %v1357 = vpack.c.bf16 %v1339, %v1338
  %v1358 = vpack.c.bf16 %v1341, %v1340
  %v1359 = vpack.c.bf16 %v1343, %v1342
  %v1360 = vld [vmem:[%s499] sm:$0xff]
  %v1361 = vld [vmem:[%s499 + $0x8] sm:$0xf]
  %v1362 = vpack.c.bf16 %v1361, %v1360
  %v1364 = vsel %vm70, %v1344, 0
  %v1367 = vsel %vm70, %v1345, 0
  %v1370 = vsel %vm70, %v1346, 0
  %v1373 = vsel %vm70, %v1347, 0
  %v1376 = vsel %vm70, %v1348, 0
  %v1379 = vsel %vm70, %v1349, 0
  %v1382 = vsel %vm70, %v1350, 0
  %v1385 = vsel %vm70, %v1351, 0
  %v1388 = vsel %vm70, %v1352, 0
  %v1391 = vsel %vm70, %v1353, 0
  %v1394 = vsel %vm70, %v1354, 0
  %v1397 = vsel %vm70, %v1355, 0
  %v1400 = vsel %vm70, %v1356, 0
  %v1403 = vsel %vm70, %v1357, 0
  %v1406 = vsel %vm70, %v1358, 0
  %v1409 = vsel %vm70, %v1359, 0
  %v1412 = vsel %vm119, %v1362, 0
  %1414 = vmatprep.subr.bf16.mxu0 0
  %1415 = vmatpush1.bf16.msra.mxu0 %v1412
  %1416 = vmatprep.subr.bf16.mxu0 0
  %1417 = vmatpush1.bf16.msra.mxu0 0
  %1418 = vmatprep.subr.bf16.mxu0 0
  %1419 = vmatpush1.bf16.msra.mxu0 0
  %1420 = vmatprep.subr.bf16.mxu0 0
  %1421 = vmatpush1.bf16.msra.mxu0 0
  %1422 = vmatprep.subr.bf16.mxu0 0
  %1423 = vmatpush1.bf16.msra.mxu0 0
  %1424 = vmatprep.subr.bf16.mxu0 0
  %1425 = vmatpush1.bf16.msra.mxu0 0
  %1426 = vmatprep.subr.bf16.mxu0 0
  %1427 = vmatpush1.bf16.msra.mxu0 0
  %1428 = vmatprep.subr.bf16.mxu0 0
  %1429 = vmatpush1.bf16.msra.mxu0 0
  %1430 = vmatprep.subr.bf16.mxu0 0
  %1431 = vmatpush1.bf16.msra.mxu0 0
  %1432 = vmatprep.subr.bf16.mxu0 0
  %1433 = vmatpush1.bf16.msra.mxu0 0
  %1434 = vmatprep.subr.bf16.mxu0 0
  %1435 = vmatpush1.bf16.msra.mxu0 0
  %1436 = vmatprep.subr.bf16.mxu0 0
  %1437 = vmatpush1.bf16.msra.mxu0 0
  %1438 = vmatprep.subr.bf16.mxu0 0
  %1439 = vmatpush1.bf16.msra.mxu0 0
  %1440 = vmatprep.subr.bf16.mxu0 0
  %1441 = vmatpush1.bf16.msra.mxu0 0
  %1442 = vmatprep.subr.bf16.mxu0 0
  %1443 = vmatpush1.bf16.msra.mxu0 0
  %1444 = vmatprep.subr.bf16.mxu0 0
  %1445 = vmatpush1.bf16.msra.mxu0 0
  %1446 = vmatprep.mubr.bf16.mxu0 0
  %1447 = vmatmul.mubr.bf16.gmra.mrb[0].mxu0 %v1364
  %v1448 = vpop.f32.mrb[0].mxu0
  %v1449 = vadd.f32 0.0, %v1448
  %v1450 = vpop.f32.mrb[0].mxu0
  %v1451 = vpop.f32.mrb[0].mxu0
  %v1452 = vadd.f32 0.0, %v1451
  %v1453 = vpop.f32.mrb[0].mxu0
  %1454 = vmatprep.mubr.bf16.mxu0 0
  %1455 = vmatmul.mubr.bf16.gmra.mrb[0].mxu0 %v1367
  %v1456 = vpop.f32.mrb[0].mxu0
  %v1457 = vadd.f32 0.0, %v1456
  %v1458 = vpop.f32.mrb[0].mxu0
  %v1459 = vpop.f32.mrb[0].mxu0
  %v1460 = vadd.f32 0.0, %v1459
  %v1461 = vpop.f32.mrb[0].mxu0
  %1462 = vmatprep.mubr.bf16.mxu0 0
  %1463 = vmatmul.mubr.bf16.gmra.mrb[0].mxu0 %v1370
  %v1464 = vpop.f32.mrb[0].mxu0
  %v1465 = vadd.f32 0.0, %v1464
  %v1466 = vpop.f32.mrb[0].mxu0
  %v1467 = vpop.f32.mrb[0].mxu0
  %v1468 = vadd.f32 0.0, %v1467
  %v1469 = vpop.f32.mrb[0].mxu0
  %1470 = vmatprep.mubr.bf16.mxu0 0
  %1471 = vmatmul.mubr.bf16.gmra.mrb[0].mxu0 %v1373
  %v1472 = vpop.f32.mrb[0].mxu0
  %v1473 = vadd.f32 0.0, %v1472
  %v1474 = vpop.f32.mrb[0].mxu0
  %v1475 = vpop.f32.mrb[0].mxu0
  %v1476 = vadd.f32 0.0, %v1475
  %v1477 = vpop.f32.mrb[0].mxu0
  %1478 = vmatprep.mubr.bf16.mxu0 0
  %1479 = vmatmul.mubr.bf16.gmra.mrb[0].mxu0 %v1376
  %v1480 = vpop.f32.mrb[0].mxu0
  %v1481 = vadd.f32 0.0, %v1480
  %v1482 = vpop.f32.mrb[0].mxu0
  %v1483 = vpop.f32.mrb[0].mxu0
  %v1484 = vadd.f32 0.0, %v1483
  %v1485 = vpop.f32.mrb[0].mxu0
  %1486 = vmatprep.mubr.bf16.mxu0 0
  %1487 = vmatmul.mubr.bf16.gmra.mrb[0].mxu0 %v1379
  %v1488 = vpop.f32.mrb[0].mxu0
  %v1489 = vadd.f32 0.0, %v1488
  %v1490 = vpop.f32.mrb[0].mxu0
  %v1491 = vpop.f32.mrb[0].mxu0
  %v1492 = vadd.f32 0.0, %v1491
  %v1493 = vpop.f32.mrb[0].mxu0
  %1494 = vmatprep.mubr.bf16.mxu0 0
  %1495 = vmatmul.mubr.bf16.gmra.mrb[0].mxu0 %v1382
  %v1496 = vpop.f32.mrb[0].mxu0
  %v1497 = vadd.f32 0.0, %v1496
  %v1498 = vpop.f32.mrb[0].mxu0
  %v1499 = vpop.f32.mrb[0].mxu0
  %v1500 = vadd.f32 0.0, %v1499
  %v1501 = vpop.f32.mrb[0].mxu0
  %1502 = vmatprep.mubr.bf16.mxu0 0
  %1503 = vmatmul.mubr.bf16.gmra.mrb[0].mxu0 %v1385
  %v1504 = vpop.f32.mrb[0].mxu0
  %v1505 = vadd.f32 0.0, %v1504
  %v1506 = vpop.f32.mrb[0].mxu0
  %v1507 = vpop.f32.mrb[0].mxu0
  %v1508 = vadd.f32 0.0, %v1507
  %v1509 = vpop.f32.mrb[0].mxu0
  %1510 = vmatprep.mubr.bf16.mxu0 0
  %1511 = vmatmul.mubr.bf16.gmra.mrb[0].mxu0 %v1388
  %v1512 = vpop.f32.mrb[0].mxu0
  %v1513 = vadd.f32 0.0, %v1512
  %v1514 = vpop.f32.mrb[0].mxu0
  %v1515 = vpop.f32.mrb[0].mxu0
  %v1516 = vadd.f32 0.0, %v1515
  %v1517 = vpop.f32.mrb[0].mxu0
  %1518 = vmatprep.mubr.bf16.mxu0 0
  %1519 = vmatmul.mubr.bf16.gmra.mrb[0].mxu0 %v1391
  %v1520 = vpop.f32.mrb[0].mxu0
  %v1521 = vadd.f32 0.0, %v1520
  %v1522 = vpop.f32.mrb[0].mxu0
  %v1523 = vpop.f32.mrb[0].mxu0
  %v1524 = vadd.f32 0.0, %v1523
  %v1525 = vpop.f32.mrb[0].mxu0
  %1526 = vmatprep.mubr.bf16.mxu0 0
  %1527 = vmatmul.mubr.bf16.gmra.mrb[0].mxu0 %v1394
  %v1528 = vpop.f32.mrb[0].mxu0
  %v1529 = vadd.f32 0.0, %v1528
  %v1530 = vpop.f32.mrb[0].mxu0
  %v1531 = vpop.f32.mrb[0].mxu0
  %v1532 = vadd.f32 0.0, %v1531
  %v1533 = vpop.f32.mrb[0].mxu0
  %1534 = vmatprep.mubr.bf16.mxu0 0
  %1535 = vmatmul.mubr.bf16.gmra.mrb[0].mxu0 %v1397
  %v1536 = vpop.f32.mrb[0].mxu0
  %v1537 = vadd.f32 0.0, %v1536
  %v1538 = vpop.f32.mrb[0].mxu0
  %v1539 = vpop.f32.mrb[0].mxu0
  %v1540 = vadd.f32 0.0, %v1539
  %v1541 = vpop.f32.mrb[0].mxu0
  %1542 = vmatprep.mubr.bf16.mxu0 0
  %1543 = vmatmul.mubr.bf16.gmra.mrb[0].mxu0 %v1400
  %v1544 = vpop.f32.mrb[0].mxu0
  %v1545 = vadd.f32 0.0, %v1544
  %v1546 = vpop.f32.mrb[0].mxu0
  %v1547 = vpop.f32.mrb[0].mxu0
  %v1548 = vadd.f32 0.0, %v1547
  %v1549 = vpop.f32.mrb[0].mxu0
  %1550 = vmatprep.mubr.bf16.mxu0 0
  %1551 = vmatmul.mubr.bf16.gmra.mrb[0].mxu0 %v1403
  %v1552 = vpop.f32.mrb[0].mxu0
  %v1553 = vadd.f32 0.0, %v1552
  %v1554 = vpop.f32.mrb[0].mxu0
  %v1555 = vpop.f32.mrb[0].mxu0
  %v1556 = vadd.f32 0.0, %v1555
  %v1557 = vpop.f32.mrb[0].mxu0
  %1558 = vmatprep.mubr.bf16.mxu0 0
  %1559 = vmatmul.mubr.bf16.gmra.mrb[0].mxu0 %v1406
  %v1560 = vpop.f32.mrb[0].mxu0
  %v1561 = vadd.f32 0.0, %v1560
  %v1562 = vpop.f32.mrb[0].mxu0
  %v1563 = vpop.f32.mrb[0].mxu0
  %v1564 = vadd.f32 0.0, %v1563
  %v1565 = vpop.f32.mrb[0].mxu0
  %1566 = vmatprep.mubr.bf16.mxu0 0
  %1567 = vmatmul.mubr.bf16.gmra.mrb[0].mxu0 %v1409
  %v1568 = vpop.f32.mrb[0].mxu0
  %v1569 = vadd.f32 0.0, %v1568
  %v1570 = vpop.f32.mrb[0].mxu0
  %v1571 = vpop.f32.mrb[0].mxu0
  %v1572 = vadd.f32 0.0, %v1571
  %v1573 = vpop.f32.mrb[0].mxu0
  %1574 = vdwg.mxu0
  %v1575 = vadd.f32 %v1186, %v1449
  %v1576 = vadd.f32 %v1189, %v1452
  %v1577 = vadd.f32 %v1194, %v1457
  %v1578 = vadd.f32 %v1197, %v1460
  %v1579 = vadd.f32 %v1202, %v1465
  %v1580 = vadd.f32 %v1205, %v1468
  %v1581 = vadd.f32 %v1210, %v1473
  %v1582 = vadd.f32 %v1213, %v1476
  %v1583 = vadd.f32 %v1218, %v1481
  %v1584 = vadd.f32 %v1221, %v1484
  %v1585 = vadd.f32 %v1226, %v1489
  %v1586 = vadd.f32 %v1229, %v1492
  %v1587 = vadd.f32 %v1234, %v1497
  %v1588 = vadd.f32 %v1237, %v1500
  %v1589 = vadd.f32 %v1242, %v1505
  %v1590 = vadd.f32 %v1245, %v1508
  %v1591 = vadd.f32 %v1250, %v1513
  %v1592 = vadd.f32 %v1253, %v1516
  %v1593 = vadd.f32 %v1258, %v1521
  %v1594 = vadd.f32 %v1261, %v1524
  %v1595 = vadd.f32 %v1266, %v1529
  %v1596 = vadd.f32 %v1269, %v1532
  %v1597 = vadd.f32 %v1274, %v1537
  %v1598 = vadd.f32 %v1277, %v1540
  %v1599 = vadd.f32 %v1282, %v1545
  %v1600 = vadd.f32 %v1285, %v1548
  %v1601 = vadd.f32 %v1290, %v1553
  %v1602 = vadd.f32 %v1293, %v1556
  %v1603 = vadd.f32 %v1298, %v1561
  %v1604 = vadd.f32 %v1301, %v1564
  %v1605 = vadd.f32 %v1306, %v1569
  %v1606 = vadd.f32 %v1309, %v1572
  %v1607 = vmax.f32 %v1575, 0.0
  %v1608 = vmax.f32 %v1576, 0.0
  %v1609 = vmax.f32 %v1577, 0.0
  %v1610 = vmax.f32 %v1578, 0.0
  %v1611 = vmax.f32 %v1579, 0.0
  %v1612 = vmax.f32 %v1580, 0.0
  %v1613 = vmax.f32 %v1581, 0.0
  %v1614 = vmax.f32 %v1582, 0.0
  %v1615 = vmax.f32 %v1583, 0.0
  %v1616 = vmax.f32 %v1584, 0.0
  %v1617 = vmax.f32 %v1585, 0.0
  %v1618 = vmax.f32 %v1586, 0.0
  %v1619 = vmax.f32 %v1587, 0.0
  %v1620 = vmax.f32 %v1588, 0.0
  %v1621 = vmax.f32 %v1589, 0.0
  %v1622 = vmax.f32 %v1590, 0.0
  %v1623 = vmax.f32 %v1591, 0.0
  %v1624 = vmax.f32 %v1592, 0.0
  %v1625 = vmax.f32 %v1593, 0.0
  %v1626 = vmax.f32 %v1594, 0.0
  %v1627 = vmax.f32 %v1595, 0.0
  %v1628 = vmax.f32 %v1596, 0.0
  %v1629 = vmax.f32 %v1597, 0.0
  %v1630 = vmax.f32 %v1598, 0.0
  %v1631 = vmax.f32 %v1599, 0.0
  %v1632 = vmax.f32 %v1600, 0.0
  %v1633 = vmax.f32 %v1601, 0.0
  %v1634 = vmax.f32 %v1602, 0.0
  %v1635 = vmax.f32 %v1603, 0.0
  %v1636 = vmax.f32 %v1604, 0.0
  %v1637 = vmax.f32 %v1605, 0.0
  %v1638 = vmax.f32 %v1606, 0.0
  %1639 = vxpose.xlu0.b32.start [1/16] %v1607, 128
  %1640 = vxpose.xlu0.b32.cont [2/16] %v1608, 128
  %1641 = vxpose.xlu0.b32.cont [3/16] %v1609, 128
  %1642 = vxpose.xlu0.b32.cont [4/16] %v1610, 128
  %1643 = vxpose.xlu0.b32.cont [5/16] %v1611, 128
  %1644 = vxpose.xlu0.b32.cont [6/16] %v1612, 128
  %1645 = vxpose.xlu0.b32.cont [7/16] %v1613, 128
  %1646 = vxpose.xlu0.b32.cont [8/16] %v1614, 128
  %1647 = vxpose.xlu0.b32.cont [9/16] %v1615, 128
  %1648 = vxpose.xlu0.b32.cont [10/16] %v1616, 128
  %1649 = vxpose.xlu0.b32.cont [11/16] %v1617, 128
  %1650 = vxpose.xlu0.b32.cont [12/16] %v1618, 128
  %1651 = vxpose.xlu0.b32.cont [13/16] %v1619, 128
  %1652 = vxpose.xlu0.b32.cont [14/16] %v1620, 128
  %1653 = vxpose.xlu0.b32.cont [15/16] %v1621, 128
  %1654 = vxpose.xlu0.b32.end [16/16] %v1622, 128
  %v1655 = vpop.trf.xlu0
  %v1656 = vpop.trf.xlu0
  %v1657 = vpop.trf.xlu0
  %v1658 = vpop.trf.xlu0
  %v1659 = vpop.trf.xlu0
  %v1660 = vpop.trf.xlu0
  %v1661 = vpop.trf.xlu0
  %v1662 = vpop.trf.xlu0
  %v1663 = vpop.trf.xlu0
  %v1664 = vpop.trf.xlu0
  %v1665 = vpop.trf.xlu0
  %v1666 = vpop.trf.xlu0
  %v1667 = vpop.trf.xlu0
  %v1668 = vpop.trf.xlu0
  %v1669 = vpop.trf.xlu0
  %v1670 = vpop.trf.xlu0
  %1671 = vxpose.xlu0.b32.start [1/16] %v1623, 128
  %1672 = vxpose.xlu0.b32.cont [2/16] %v1624, 128
  %1673 = vxpose.xlu0.b32.cont [3/16] %v1625, 128
  %1674 = vxpose.xlu0.b32.cont [4/16] %v1626, 128
  %1675 = vxpose.xlu0.b32.cont [5/16] %v1627, 128
  %1676 = vxpose.xlu0.b32.cont [6/16] %v1628, 128
  %1677 = vxpose.xlu0.b32.cont [7/16] %v1629, 128
  %1678 = vxpose.xlu0.b32.cont [8/16] %v1630, 128
  %1679 = vxpose.xlu0.b32.cont [9/16] %v1631, 128
  %1680 = vxpose.xlu0.b32.cont [10/16] %v1632, 128
  %1681 = vxpose.xlu0.b32.cont [11/16] %v1633, 128
  %1682 = vxpose.xlu0.b32.cont [12/16] %v1634, 128
  %1683 = vxpose.xlu0.b32.cont [13/16] %v1635, 128
  %1684 = vxpose.xlu0.b32.cont [14/16] %v1636, 128
  %1685 = vxpose.xlu0.b32.cont [15/16] %v1637, 128
  %1686 = vxpose.xlu0.b32.end [16/16] %v1638, 128
  %v1687 = vpop.trf.xlu0
  %v1688 = vpop.trf.xlu0
  %v1689 = vpop.trf.xlu0
  %v1690 = vpop.trf.xlu0
  %v1691 = vpop.trf.xlu0
  %v1692 = vpop.trf.xlu0
  %v1693 = vpop.trf.xlu0
  %v1694 = vpop.trf.xlu0
  %v1695 = vpop.trf.xlu0
  %v1696 = vpop.trf.xlu0
  %v1697 = vpop.trf.xlu0
  %v1698 = vpop.trf.xlu0
  %v1699 = vpop.trf.xlu0
  %v1700 = vpop.trf.xlu0
  %v1701 = vpop.trf.xlu0
  %v1702 = vpop.trf.xlu0
  %s1703 = scalar_lea.vmem %s2, 256
  %1704 = vst [vmem:[%s1703] sm:$0xff] %v1655
  %1705 = vst [vmem:[%s1703 + $0x8] sm:$0xff] %v1687
  %1706 = vst [vmem:[%s1703 + $0x10] sm:$0xff] %v1656
  %1707 = vst [vmem:[%s1703 + $0x18] sm:$0xff] %v1688
  %1708 = vst [vmem:[%s1703 + $0x20] sm:$0xff] %v1657
  %1709 = vst [vmem:[%s1703 + $0x28] sm:$0xff] %v1689
  %1710 = vst [vmem:[%s1703 + $0x30] sm:$0xff] %v1658
  %1711 = vst [vmem:[%s1703 + $0x38] sm:$0xff] %v1690
  %1712 = vst [vmem:[%s1703 + $0x40] sm:$0xff] %v1659
  %1713 = vst [vmem:[%s1703 + $0x48] sm:$0xff] %v1691
  %1714 = vst [vmem:[%s1703 + $0x50] sm:$0xff] %v1660
  %1715 = vst [vmem:[%s1703 + $0x58] sm:$0xff] %v1692
  %1716 = vst [vmem:[%s1703 + $0x60] sm:$0xff] %v1661
  %1717 = vst [vmem:[%s1703 + $0x68] sm:$0xff] %v1693
  %1718 = vst [vmem:[%s1703 + $0x70] sm:$0xff] %v1662
  %1719 = vst [vmem:[%s1703 + $0x78] sm:$0xff] %v1694
  %1720 = vst [vmem:[%s1703 + $0x80] sm:$0xff] %v1663
  %1721 = vst [vmem:[%s1703 + $0x88] sm:$0xff] %v1695
  %1722 = vst [vmem:[%s1703 + $0x90] sm:$0xff] %v1664
  %1723 = vst [vmem:[%s1703 + $0x98] sm:$0xff] %v1696
  %1724 = vst [vmem:[%s1703 + $0xa0] sm:$0xff] %v1665
  %1725 = vst [vmem:[%s1703 + $0xa8] sm:$0xff] %v1697
  %1726 = vst [vmem:[%s1703 + $0xb0] sm:$0xff] %v1666
  %1727 = vst [vmem:[%s1703 + $0xb8] sm:$0xff] %v1698
  %1728 = vst [vmem:[%s1703 + $0xc0] sm:$0xff] %v1667
  %1729 = vst [vmem:[%s1703 + $0xc8] sm:$0xff] %v1699
  %1730 = vst [vmem:[%s1703 + $0xd0] sm:$0xff] %v1668
  %1731 = vst [vmem:[%s1703 + $0xd8] sm:$0xff] %v1700
  %1732 = vst [vmem:[%s1703 + $0xe0] sm:$0xff] %v1669
  %1733 = vst [vmem:[%s1703 + $0xe8] sm:$0xff] %v1701
  %1734 = vst [vmem:[%s1703 + $0xf0] sm:$0xff] %v1670
  %1735 = vst [vmem:[%s1703 + $0xf8] sm:$0xff] %v1702
  // Predicated region
  $region10: #{conv_circular_relu.1} parent=0 // pred_check
    _
  $region11: #{conv_circular_relu.1} parent=0 // pred_check_branch
    %1737 = sbr.rel (0) target = $region13
  $region12: #{conv_circular_relu.1} parent=0 // pred_region
    _
  $region13: #{conv_circular_relu.1} parent=0 // pred_fallthru
    _
  // Predicated region
  $region14: #{conv_circular_relu.1} parent=0 // pred_check
    _
  $region15: #{conv_circular_relu.1} parent=0 // pred_check_branch
    %1739 = sbr.rel (0) target = $region17
  $region16: #{conv_circular_relu.1} parent=0 // pred_region
    _
  $region17: #{conv_circular_relu.1} parent=0 // pred_fallthru
    _

</llo_original>
